<compile_context>
chip_gen: v7x
topology: tpu7x:2x2x1
jax: 0.10.0
libtpu: 0.0.40
codegen_flags: <defaults>
</compile_context>

<pallas_src>
from functools import partial

import jax
import jax.numpy as jnp
import numpy as np
from jax.experimental import pallas as pl
from jax.experimental.pallas import tpu as pltpu


# ----------------------------------------------------------------------------
# Model hyper-parameters (the `args` of IT_Base_Net), small test-sized values.
# ----------------------------------------------------------------------------
class Args:
    input_size = 2                 # (x, y) trajectory points
    input_embedding_size = 32
    encoder_size = 32
    dyn_embedding_size = 32        # dyn_emb is declared in __init__ but unused
    decoder_size = 32
    out_length = 5


ARGS = Args()
VMEM_SPEC = pl.BlockSpec(memory_space=pltpu.MemorySpace.VMEM)


def _leaky_relu(x):
    # nn.LeakyReLU(0.1) in the original module (explicit slope, not the default).
    return jnp.where(x > 0, x, 0.1 * x)


# ----------------------------------------------------------------------------
# Fused kernel: ip_emb + (veh|ped) GRU + mask-select + (veh|ped) 2-layer LSTM
#               + mask-select, all in VMEM.
#
# Fused gate layout (lane axis): per gate, [veh | ped] side by side.
#   GRU  gates = [r_v|r_p|z_v|z_p|n_v|n_p]              (6H = 192 lanes)
#   LSTM gates = [i_v|i_p|f_v|f_p|o_v|o_p|g_v|g_p]      (8D = 256 lanes)
# Hidden-side weights are per-gate block-diagonal over the fused hidden state
# [h_veh | h_ped], so the two branches' recurrences never mix.
# ----------------------------------------------------------------------------
def _it_base_net_kernel(hist_ref, vm_ref, pm_ref,
                        w_emb_ref, b_emb_ref,
                        w_ihe_ref, b_ihe_ref, w_hhe_ref, b_hhn_ref,
                        w_ih0_ref, b0_ref, w_hh0_ref,
                        w1_ref, b1_ref,
                        enc_out_ref, dec_out_ref):
    N = vm_ref.shape[0]
    T = hist_ref.shape[0] // N
    HE = w_hhe_ref.shape[0]                 # 2 * encoder_size  (fused [veh|ped])
    H = HE // 2
    HD = w_hh0_ref.shape[0]                 # 2 * decoder_size
    D = HD // 2
    L = dec_out_ref.shape[0] // N

    vm = vm_ref[...]                        # (N, 1) float {0,1}
    pm = pm_ref[...]
    sel_v = (1.0 - pm) * vm                 # hoisted; ped wins on overlap

    # ------------------ ip_emb on the VPU (K=2 contraction) ------------------
    x = hist_ref[...]                       # (T*N, 2)
    w_emb = w_emb_ref[...]                  # (2, E)
    emb = _leaky_relu(x[:, 0:1] * w_emb[0:1, :] + x[:, 1:2] * w_emb[1:2, :]
                      + b_emb_ref[...])                               # (T*N, E)

    # ------------------ RNN_Encoder (fused veh+ped GRU, hidden 2H) -----------
    # Hoisted input-side gemm (bf16 operands, f32 accumulate); b_hh's r/z part
    # is already folded into b_ihe at fuse time.
    gi_all = jnp.dot(emb.astype(jnp.bfloat16), w_ihe_ref[...],
                     preferred_element_type=jnp.float32) + b_ihe_ref[...]  # (T*N, 6H)

    w_hhe = w_hhe_ref[...]                  # (2H, 6H) bf16, ~6 vregs resident
    b_hhn = b_hhn_ref[...]                  # (1, 2H) n-gate hidden bias

    h = jnp.zeros((N, HE), jnp.float32)     # [h_veh | h_ped]
    for t in range(T):                      # fully unrolled (T static)
        gi = gi_all[t * N:(t + 1) * N, :]
        gh = jnp.dot(h.astype(jnp.bfloat16), w_hhe,
                     preferred_element_type=jnp.float32)
        rz = jax.nn.sigmoid(gi[:, :2 * HE] + gh[:, :2 * HE])   # one 128-lane push
        r, z = rz[:, :HE], rz[:, HE:]
        n = jnp.tanh(gi[:, 2 * HE:] + r * (gh[:, 2 * HE:] + b_hhn))
        h = (1.0 - z) * n + z * h

    # PyTorch else-branch: zeros init, write veh rows, then ped rows (ped wins
    # overlap; masks are disjoint in practice), then LeakyReLU.
    enc_sel = _leaky_relu(pm * h[:, H:] + sel_v * h[:, :H])            # (N, H)
    enc_out_ref[...] = enc_sel

    # ------------------ decode (fused veh+ped 2-layer LSTM, hidden 2D) -------
    # TODO(synk): IT_Base_Net.forward is NotImplementedError; the 2*encoder_size
    # decoder input is stood in by concat([Hist_Enc, Hist_Enc]) (non-canonical).
    x_dec = jnp.concatenate([enc_sel, enc_sel], axis=-1).astype(jnp.bfloat16)
    # Layer-0 input gemm is loop-invariant (same enc every step) -> hoist.
    # b0 already contains b_ih0 + b_hh0 (folded at fuse time).
    gi0 = jnp.dot(x_dec, w_ih0_ref[...],
                  preferred_element_type=jnp.float32) + b0_ref[...]    # (N, 8D)

    w_hh0 = w_hh0_ref[...]                  # (2D, 8D) bf16
    w_1 = w1_ref[...]                       # (4D, 8D) bf16: [w_ih1; w_hh1] stacked
    b_1 = b1_ref[...]                       # (1, 8D) = b_ih1 + b_hh1

    def lstm_gates(g, c):                   # fused gate layout [i|f|o|g]
        s = jax.nn.sigmoid(g[:, :3 * HD])   # one 192-lane EUP push for i,f,o
        gg = jnp.tanh(g[:, 3 * HD:])
        i, f, o = s[:, :HD], s[:, HD:2 * HD], s[:, 2 * HD:3 * HD]
        c_new = f * c + i * gg
        return o * jnp.tanh(c_new), c_new

    z2 = jnp.zeros((N, HD), jnp.float32)
    h0, c0, h1, c1 = z2, z2, z2, z2
    h1_sel = []
    for _ in range(L):                      # fully unrolled (L static)
        g0 = gi0 + jnp.dot(h0.astype(jnp.bfloat16), w_hh0,
                           preferred_element_type=jnp.float32)
        h0, c0 = lstm_gates(g0, c0)
        # Layer-1: single 128-deep contraction covering both input and hidden.
        g1 = jnp.dot(jnp.concatenate([h0, h1], axis=-1).astype(jnp.bfloat16),
                     w_1, preferred_element_type=jnp.float32) + b_1
        h1, c1 = lstm_gates(g1, c1)
        # Mask-select on Hist_Dec rows (rows in neither mask stay zero).
        h1_sel.append(pm * h1[:, D:] + sel_v * h1[:, :D])

    # Store the selected decoder states (L*N, D=32 lanes); the (D,2) op Linear
    # and the transpose are applied in the wrapper (lane-denser store).
    dec_out_ref[...] = jnp.concatenate(h1_sel, axis=0)                 # (L*N, D)


@partial(jax.jit, static_argnames=("out_length",))
def it_base_net_apply(fused, hist, veh_mask, ped_mask, out_length):
    """hist: (N, T, In) batch_first -> (Hist_Enc (N,H), fut_pred (N,L,2))."""
    N, T, In = hist.shape
    H = fused["enc"]["w_hh"].shape[0] // 2
    D = fused["op"]["w"].shape[0]
    hist_flat = jnp.transpose(hist, (1, 0, 2)).reshape(T * N, In)   # time-major rows
    vm = veh_mask.astype(jnp.float32).reshape(N, 1)
    pm = ped_mask.astype(jnp.float32).reshape(N, 1)

    enc, dec_tm = pl.pallas_call(
        _it_base_net_kernel,
        out_shape=(jax.ShapeDtypeStruct((N, H), jnp.float32),
                   jax.ShapeDtypeStruct((out_length * N, D), jnp.float32)),
        in_specs=[VMEM_SPEC] * 14,
        out_specs=(VMEM_SPEC, VMEM_SPEC),
    )(hist_flat, vm, pm,
      fused["w_emb"], fused["b_emb"],
      fused["enc"]["w_ih"], fused["enc"]["b_ih"],
      fused["enc"]["w_hh"], fused["enc"]["b_hh_n"],
      fused["dec"]["w_ih0"], fused["dec"]["b0"],
      fused["dec"]["w_hh0"],
      fused["dec"]["w_1"], fused["dec"]["b_1"])

    # op Linear + (L,N,D) -> (N,L,2) reshape/transpose kept in the wrapper.
    hid = jnp.transpose(dec_tm.reshape(out_length, N, D), (1, 0, 2))
    fut = hid @ fused["op"]["w"] + fused["op"]["b"]
    return enc, fut


# ----------------------------------------------------------------------------
# Weight fusion: interleave gate columns [g_veh | g_ped], make hidden-side
# weights per-gate block-diagonal over [h_veh | h_ped], reorder LSTM gates to
# [i|f|o|g], fold constant hidden biases into the hoisted input biases, stack
# the layer-1 LSTM weights, and cast matmul weights to bf16.
# Done ONCE at init time (plain XLA ops, outside the kernel).
# ----------------------------------------------------------------------------
def _interleave_gate_cols(wv, wp, gw, ng):
    blocks = []
    for g in range(ng):
        blocks.append(wv[:, g * gw:(g + 1) * gw])
        blocks.append(wp[:, g * gw:(g + 1) * gw])
    return jnp.concatenate(blocks, axis=1)


def _blockdiag_gate_cols(wv, wp, gw, ng):
    zv = jnp.zeros_like(wv[:, :gw])
    zp = jnp.zeros_like(wp[:, :gw])
    cols = []
    for g in range(ng):
        cols.append(jnp.concatenate([wv[:, g * gw:(g + 1) * gw], zp], axis=0))
        cols.append(jnp.concatenate([zv, wp[:, g * gw:(g + 1) * gw]], axis=0))
    return jnp.concatenate(cols, axis=1)


def _reorder_lstm_gates(w, gw):
    # canonical PyTorch LSTM gate order [i|f|g|o] -> kernel order [i|f|o|g]
    return jnp.concatenate([w[:, :2 * gw], w[:, 3 * gw:], w[:, 2 * gw:3 * gw]],
                           axis=1)


def fuse_params(params, args):
    H, D = args.encoder_size, args.decoder_size
    ve, pe = params["veh_enc"], params["ped_enc"]
    vd, pd = params["veh_dec"], params["ped_dec"]
    bf = lambda w: w.astype(jnp.bfloat16)

    # ---- encoder GRU (gate order [r|z|n]) -----------------------------------
    b_ih = _interleave_gate_cols(ve["b_ih"], pe["b_ih"], H, 3)
    b_hh = _interleave_gate_cols(ve["b_hh"], pe["b_hh"], H, 3)
    enc = dict(
        w_ih=bf(_interleave_gate_cols(ve["w_ih"], pe["w_ih"], H, 3)),   # shared emb in
        # Fold the r/z part of the hidden bias into the hoisted input bias; the
        # n-gate hidden bias must stay separate (it is multiplied by r).
        b_ih=b_ih.at[:, :4 * H].add(b_hh[:, :4 * H]),
        w_hh=bf(_blockdiag_gate_cols(ve["w_hh"], pe["w_hh"], H, 3)),    # per-branch h
        b_hh_n=b_hh[:, 4 * H:],
    )

    # ---- decoder LSTMs, gates reordered to [i|f|o|g] ------------------------
    def r(w):
        return _reorder_lstm_gates(w, D)

    dec = dict(
        w_ih0=bf(_interleave_gate_cols(r(vd["w_ih0"]), r(pd["w_ih0"]), D, 4)),
        b0=(_interleave_gate_cols(r(vd["b_ih0"]), r(pd["b_ih0"]), D, 4)
            + _interleave_gate_cols(r(vd["b_hh0"]), r(pd["b_hh0"]), D, 4)),
        w_hh0=bf(_blockdiag_gate_cols(r(vd["w_hh0"]), r(pd["w_hh0"]), D, 4)),
        # Layer-1: stack [w_ih1; w_hh1] so [h0|h1] (N, 4D=128) needs ONE MXU push.
        w_1=bf(jnp.concatenate(
            [_blockdiag_gate_cols(r(vd["w_ih1"]), r(pd["w_ih1"]), D, 4),
             _blockdiag_gate_cols(r(vd["w_hh1"]), r(pd["w_hh1"]), D, 4)], axis=0)),
        b_1=(_interleave_gate_cols(r(vd["b_ih1"]), r(pd["b_ih1"]), D, 4)
             + _interleave_gate_cols(r(vd["b_hh1"]), r(pd["b_hh1"]), D, 4)),
    )
    return dict(w_emb=params["ip_emb"]["w"], b_emb=params["ip_emb"]["b"],
                enc=enc, dec=dec, op=params["op"])


# ----------------------------------------------------------------------------
# Deterministic parameter init (PyTorch-style U(-k, k)), unfused layout:
# weights (in, out), gate order GRU [r|z|n], LSTM [i|f|g|o].
# ----------------------------------------------------------------------------
def _uniform(key, shape, k):
    return jax.random.uniform(key, shape, jnp.float32, minval=-k, maxval=k)


def init_params(key, args):
    ks = iter(jax.random.split(key, 64))
    E, H, D = args.input_embedding_size, args.encoder_size, args.decoder_size
    k_emb = 1.0 / (args.input_size ** 0.5)
    k_enc = 1.0 / (H ** 0.5)
    k_dec = 1.0 / (D ** 0.5)

    def gru_branch():
        return dict(w_ih=_uniform(next(ks), (E, 3 * H), k_enc),
                    b_ih=_uniform(next(ks), (1, 3 * H), k_enc),
                    w_hh=_uniform(next(ks), (H, 3 * H), k_enc),
                    b_hh=_uniform(next(ks), (1, 3 * H), k_enc))

    def lstm_branch():
        return dict(w_ih0=_uniform(next(ks), (2 * H, 4 * D), k_dec),
                    b_ih0=_uniform(next(ks), (1, 4 * D), k_dec),
                    w_hh0=_uniform(next(ks), (D, 4 * D), k_dec),
                    b_hh0=_uniform(next(ks), (1, 4 * D), k_dec),
                    w_ih1=_uniform(next(ks), (D, 4 * D), k_dec),
                    b_ih1=_uniform(next(ks), (1, 4 * D), k_dec),
                    w_hh1=_uniform(next(ks), (D, 4 * D), k_dec),
                    b_hh1=_uniform(next(ks), (1, 4 * D), k_dec))

    return dict(
        ip_emb=dict(w=_uniform(next(ks), (args.input_size, E), k_emb),
                    b=_uniform(next(ks), (1, E), k_emb)),
        veh_enc=gru_branch(), ped_enc=gru_branch(),
        veh_dec=lstm_branch(), ped_dec=lstm_branch(),
        op=dict(w=_uniform(next(ks), (D, 2), k_dec),
                b=_uniform(next(ks), (1, 2), k_dec)),
        # dyn_emb is declared in IT_Base_Net.__init__ but never used in
        # RNN_Encoder/decode; initialized for fidelity, not consumed.
        dyn_emb=dict(w=_uniform(next(ks), (H, args.dyn_embedding_size), k_enc),
                     b=_uniform(next(ks), (1, args.dyn_embedding_size), k_enc)),
    )


# ----------------------------------------------------------------------------
# Pure-JAX (unfused, per-branch, f32) reference mirroring the PyTorch
# semantics, used only to verify the fused bf16-MXU kernel numerically.
# ----------------------------------------------------------------------------
def ref_forward(params, hist, veh_mask, ped_mask, args):
    H, D, L = args.encoder_size, args.decoder_size, args.out_length
    N, T, _ = hist.shape
    emb = _leaky_relu(jnp.einsum("nti,ie->nte", hist, params["ip_emb"]["w"])
                      + params["ip_emb"]["b"])

    def gru(p):
        h = jnp.zeros((N, H), jnp.float32)
        for t in range(T):
            gi = emb[:, t, :] @ p["w_ih"] + p["b_ih"]
            gh = h @ p["w_hh"] + p["b_hh"]
            r = jax.nn.sigmoid(gi[:, :H] + gh[:, :H])
            z = jax.nn.sigmoid(gi[:, H:2 * H] + gh[:, H:2 * H])
            n = jnp.tanh(gi[:, 2 * H:] + r * gh[:, 2 * H:])
            h = (1.0 - z) * n + z * h
        return h

    hv, hp = gru(params["veh_enc"]), gru(params["ped_enc"])
    vm, pm = veh_mask[:, None], ped_mask[:, None]
    enc = _leaky_relu(jnp.where(pm, hp, jnp.where(vm, hv, 0.0)))

    x = jnp.concatenate([enc, enc], axis=-1)

    def lstm(p):
        def cell(xin, h, c, wih, bih, whh, bhh):
            g = xin @ wih + bih + h @ whh + bhh
            i = jax.nn.sigmoid(g[:, :D])
            f = jax.nn.sigmoid(g[:, D:2 * D])
            gg = jnp.tanh(g[:, 2 * D:3 * D])
            o = jax.nn.sigmoid(g[:, 3 * D:])
            c = f * c + i * gg
            return o * jnp.tanh(c), c
        z0 = jnp.zeros((N, D), jnp.float32)
        h0, c0, h1, c1 = z0, z0, z0, z0
        outs = []
        for _ in range(L):
            h0, c0 = cell(x, h0, c0, p["w_ih0"], p["b_ih0"], p["w_hh0"], p["b_hh0"])
            h1, c1 = cell(h0, h1, c1, p["w_ih1"], p["b_ih1"], p["w_hh1"], p["b_hh1"])
            outs.append(h1)
        return jnp.stack(outs, axis=1)               # (N, L, D)

    dv, dp = lstm(params["veh_dec"]), lstm(params["ped_dec"])
    hist_dec = jnp.where(pm[:, :, None], dp, jnp.where(vm[:, :, None], dv, 0.0))
    fut = hist_dec @ params["op"]["w"] + params["op"]["b"]
    return enc, fut


# ----------------------------------------------------------------------------
if __name__ == "__main__":
    key = jax.random.PRNGKey(0)
    k_param, k_hist = jax.random.split(key)

    N, T = 8, 8
    params = init_params(k_param, ARGS)
    fused = fuse_params(params, ARGS)

    hist = jax.random.normal(k_hist, (N, T, ARGS.input_size), jnp.float32)
    # Mixed masks (exercises the general else-branch: 5 veh, 2 ped, 1 neither).
    veh_mask = jnp.array([True, True, True, True, True, False, False, False])
    ped_mask = jnp.array([False, False, False, False, False, True, True, False])

    hist_enc, fut_pred = it_base_net_apply(fused, hist, veh_mask, ped_mask,
                                           ARGS.out_length)
    jax.block_until_ready((hist_enc, fut_pred))

    # Numerical check against the unfused pure-JAX f32 reference (tolerance
    # absorbs bf16 MXU operand rounding over the T=8 GRU + L=5 LSTM chain).
    enc_ref, fut_ref = ref_forward(params, hist, veh_mask, ped_mask, ARGS)
    np.testing.assert_allclose(np.asarray(hist_enc), np.asarray(enc_ref),
                               rtol=5e-2, atol=5e-2)
    np.testing.assert_allclose(np.asarray(fut_pred), np.asarray(fut_ref),
                               rtol=5e-2, atol=5e-2)

    assert hist_enc.shape == (N, ARGS.encoder_size)
    assert fut_pred.shape == (N, ARGS.out_length, 2)
    print("KERNEL_OK")
</pallas_src>

<mosaic_0001>
module attributes {stable_mosaic.version = 11 : i64} {
  func.func @_it_base_net_kernel(%arg0: memref<64x2xf32, #tpu.memory_space<vmem>>, %arg1: memref<8x1xf32, #tpu.memory_space<vmem>>, %arg2: memref<8x1xf32, #tpu.memory_space<vmem>>, %arg3: memref<2x32xf32, #tpu.memory_space<vmem>>, %arg4: memref<1x32xf32, #tpu.memory_space<vmem>>, %arg5: memref<32x192xbf16, #tpu.memory_space<vmem>>, %arg6: memref<1x192xf32, #tpu.memory_space<vmem>>, %arg7: memref<64x192xbf16, #tpu.memory_space<vmem>>, %arg8: memref<1x64xf32, #tpu.memory_space<vmem>>, %arg9: memref<64x256xbf16, #tpu.memory_space<vmem>>, %arg10: memref<1x256xf32, #tpu.memory_space<vmem>>, %arg11: memref<64x256xbf16, #tpu.memory_space<vmem>>, %arg12: memref<128x256xbf16, #tpu.memory_space<vmem>>, %arg13: memref<1x256xf32, #tpu.memory_space<vmem>>, %arg14: memref<8x32xf32, #tpu.memory_space<vmem>>, %arg15: memref<40x32xf32, #tpu.memory_space<vmem>>) attributes {dimension_semantics = [], scalar_prefetch = 0 : i64, scratch_operands = 0 : i64, tpu.core_type = #tpu.core_type<tc>} {
    %c0 = arith.constant 0 : index
    %c0_0 = arith.constant 0 : index
    %0 = vector.load %arg1[%c0, %c0_0] : memref<8x1xf32, #tpu.memory_space<vmem>>, vector<8x1xf32>
    %c0_1 = arith.constant 0 : index
    %c0_2 = arith.constant 0 : index
    %1 = vector.load %arg2[%c0_1, %c0_2] : memref<8x1xf32, #tpu.memory_space<vmem>>, vector<8x1xf32>
    %cst = arith.constant 1.000000e+00 : f32
    %2 = vector.broadcast %cst : f32 to vector<8x1xf32>
    %3 = arith.subf %2, %1 : vector<8x1xf32>
    %4 = arith.mulf %3, %0 : vector<8x1xf32>
    %c0_3 = arith.constant 0 : index
    %c0_4 = arith.constant 0 : index
    %5 = vector.load %arg0[%c0_3, %c0_4] : memref<64x2xf32, #tpu.memory_space<vmem>>, vector<64x2xf32>
    %c0_5 = arith.constant 0 : index
    %c0_6 = arith.constant 0 : index
    %6 = vector.load %arg3[%c0_5, %c0_6] : memref<2x32xf32, #tpu.memory_space<vmem>>, vector<2x32xf32>
    %7 = vector.extract_strided_slice %5 {offsets = [0, 0], sizes = [64, 1], strides = [1, 1]} : vector<64x2xf32> to vector<64x1xf32>
    %8 = vector.extract_strided_slice %6 {offsets = [0, 0], sizes = [1, 32], strides = [1, 1]} : vector<2x32xf32> to vector<1x32xf32>
    %9 = vector.broadcast %7 : vector<64x1xf32> to vector<64x32xf32>
    %10 = vector.broadcast %8 : vector<1x32xf32> to vector<64x32xf32>
    %11 = arith.mulf %9, %10 : vector<64x32xf32>
    %12 = vector.extract_strided_slice %5 {offsets = [0, 1], sizes = [64, 1], strides = [1, 1]} : vector<64x2xf32> to vector<64x1xf32>
    %13 = vector.extract_strided_slice %6 {offsets = [1, 0], sizes = [1, 32], strides = [1, 1]} : vector<2x32xf32> to vector<1x32xf32>
    %14 = vector.broadcast %12 : vector<64x1xf32> to vector<64x32xf32>
    %15 = vector.broadcast %13 : vector<1x32xf32> to vector<64x32xf32>
    %16 = arith.mulf %14, %15 : vector<64x32xf32>
    %17 = arith.addf %11, %16 : vector<64x32xf32>
    %c0_7 = arith.constant 0 : index
    %c0_8 = arith.constant 0 : index
    %18 = vector.load %arg4[%c0_7, %c0_8] : memref<1x32xf32, #tpu.memory_space<vmem>>, vector<1x32xf32>
    %19 = vector.broadcast %18 : vector<1x32xf32> to vector<64x32xf32>
    %20 = arith.addf %17, %19 : vector<64x32xf32>
    %cst_9 = arith.constant 0.000000e+00 : f32
    %21 = vector.broadcast %cst_9 : f32 to vector<64x32xf32>
    %22 = arith.cmpf ogt, %20, %21 : vector<64x32xf32>
    %cst_10 = arith.constant 1.000000e-01 : f32
    %23 = vector.broadcast %cst_10 : f32 to vector<64x32xf32>
    %24 = arith.mulf %23, %20 : vector<64x32xf32>
    %25 = arith.select %22, %20, %24 : vector<64x32xi1>, vector<64x32xf32>
    %26 = arith.truncf %25 : vector<64x32xf32> to vector<64x32xbf16>
    %c0_11 = arith.constant 0 : index
    %c0_12 = arith.constant 0 : index
    %27 = vector.load %arg5[%c0_11, %c0_12] : memref<32x192xbf16, #tpu.memory_space<vmem>>, vector<32x192xbf16>
    %cst_13 = arith.constant dense<0.000000e+00> : vector<64x192xf32>
    %28 = tpu.matmul %26, %27, %cst_13 {dimension_numbers = #tpu.dot_dimension_numbers<[1], [0], [0], [1], [0, 0, 1, 1], [], []>} : vector<64x32xbf16>, vector<32x192xbf16>, vector<64x192xf32> -> vector<64x192xf32>
    %c0_14 = arith.constant 0 : index
    %c0_15 = arith.constant 0 : index
    %29 = vector.load %arg6[%c0_14, %c0_15] : memref<1x192xf32, #tpu.memory_space<vmem>>, vector<1x192xf32>
    %30 = vector.broadcast %29 : vector<1x192xf32> to vector<64x192xf32>
    %31 = arith.addf %28, %30 : vector<64x192xf32>
    %c0_16 = arith.constant 0 : index
    %c0_17 = arith.constant 0 : index
    %32 = vector.load %arg7[%c0_16, %c0_17] : memref<64x192xbf16, #tpu.memory_space<vmem>>, vector<64x192xbf16>
    %c0_18 = arith.constant 0 : index
    %c0_19 = arith.constant 0 : index
    %33 = vector.load %arg8[%c0_18, %c0_19] : memref<1x64xf32, #tpu.memory_space<vmem>>, vector<1x64xf32>
    %cst_20 = arith.constant 0.000000e+00 : f32
    %34 = vector.broadcast %cst_20 : f32 to vector<8x64xf32>
    %35 = vector.extract_strided_slice %31 {offsets = [0, 0], sizes = [8, 192], strides = [1, 1]} : vector<64x192xf32> to vector<8x192xf32>
    %36 = arith.truncf %34 : vector<8x64xf32> to vector<8x64xbf16>
    %cst_21 = arith.constant dense<0.000000e+00> : vector<8x192xf32>
    %37 = tpu.matmul %36, %32, %cst_21 {dimension_numbers = #tpu.dot_dimension_numbers<[1], [0], [0], [1], [0, 0, 1, 1], [], []>} : vector<8x64xbf16>, vector<64x192xbf16>, vector<8x192xf32> -> vector<8x192xf32>
    %38 = vector.extract_strided_slice %35 {offsets = [0, 0], sizes = [8, 128], strides = [1, 1]} : vector<8x192xf32> to vector<8x128xf32>
    %39 = vector.extract_strided_slice %37 {offsets = [0, 0], sizes = [8, 128], strides = [1, 1]} : vector<8x192xf32> to vector<8x128xf32>
    %40 = arith.addf %38, %39 : vector<8x128xf32>
    %41 = arith.negf %40 : vector<8x128xf32>
    %42 = math.exp %41 : vector<8x128xf32>
    %cst_22 = arith.constant 1.000000e+00 : f32
    %43 = vector.broadcast %cst_22 : f32 to vector<8x128xf32>
    %44 = arith.addf %43, %42 : vector<8x128xf32>
    %45 = arith.divf %43, %44 : vector<8x128xf32>
    %46 = vector.extract_strided_slice %45 {offsets = [0, 0], sizes = [8, 64], strides = [1, 1]} : vector<8x128xf32> to vector<8x64xf32>
    %47 = vector.extract_strided_slice %45 {offsets = [0, 64], sizes = [8, 64], strides = [1, 1]} : vector<8x128xf32> to vector<8x64xf32>
    %48 = vector.extract_strided_slice %35 {offsets = [0, 128], sizes = [8, 64], strides = [1, 1]} : vector<8x192xf32> to vector<8x64xf32>
    %49 = vector.extract_strided_slice %37 {offsets = [0, 128], sizes = [8, 64], strides = [1, 1]} : vector<8x192xf32> to vector<8x64xf32>
    %50 = vector.broadcast %33 : vector<1x64xf32> to vector<8x64xf32>
    %51 = arith.addf %49, %50 : vector<8x64xf32>
    %52 = arith.mulf %46, %51 : vector<8x64xf32>
    %53 = arith.addf %48, %52 : vector<8x64xf32>
    %54 = math.tanh %53 : vector<8x64xf32>
    %cst_23 = arith.constant 1.000000e+00 : f32
    %55 = vector.broadcast %cst_23 : f32 to vector<8x64xf32>
    %56 = arith.subf %55, %47 : vector<8x64xf32>
    %57 = arith.mulf %56, %54 : vector<8x64xf32>
    %58 = arith.mulf %47, %34 : vector<8x64xf32>
    %59 = arith.addf %57, %58 : vector<8x64xf32>
    %60 = vector.extract_strided_slice %31 {offsets = [8, 0], sizes = [8, 192], strides = [1, 1]} : vector<64x192xf32> to vector<8x192xf32>
    %61 = arith.truncf %59 : vector<8x64xf32> to vector<8x64xbf16>
    %cst_24 = arith.constant dense<0.000000e+00> : vector<8x192xf32>
    %62 = tpu.matmul %61, %32, %cst_24 {dimension_numbers = #tpu.dot_dimension_numbers<[1], [0], [0], [1], [0, 0, 1, 1], [], []>} : vector<8x64xbf16>, vector<64x192xbf16>, vector<8x192xf32> -> vector<8x192xf32>
    %63 = vector.extract_strided_slice %60 {offsets = [0, 0], sizes = [8, 128], strides = [1, 1]} : vector<8x192xf32> to vector<8x128xf32>
    %64 = vector.extract_strided_slice %62 {offsets = [0, 0], sizes = [8, 128], strides = [1, 1]} : vector<8x192xf32> to vector<8x128xf32>
    %65 = arith.addf %63, %64 : vector<8x128xf32>
    %66 = arith.negf %65 : vector<8x128xf32>
    %67 = math.exp %66 : vector<8x128xf32>
    %cst_25 = arith.constant 1.000000e+00 : f32
    %68 = vector.broadcast %cst_25 : f32 to vector<8x128xf32>
    %69 = arith.addf %68, %67 : vector<8x128xf32>
    %70 = arith.divf %68, %69 : vector<8x128xf32>
    %71 = vector.extract_strided_slice %70 {offsets = [0, 0], sizes = [8, 64], strides = [1, 1]} : vector<8x128xf32> to vector<8x64xf32>
    %72 = vector.extract_strided_slice %70 {offsets = [0, 64], sizes = [8, 64], strides = [1, 1]} : vector<8x128xf32> to vector<8x64xf32>
    %73 = vector.extract_strided_slice %60 {offsets = [0, 128], sizes = [8, 64], strides = [1, 1]} : vector<8x192xf32> to vector<8x64xf32>
    %74 = vector.extract_strided_slice %62 {offsets = [0, 128], sizes = [8, 64], strides = [1, 1]} : vector<8x192xf32> to vector<8x64xf32>
    %75 = vector.broadcast %33 : vector<1x64xf32> to vector<8x64xf32>
    %76 = arith.addf %74, %75 : vector<8x64xf32>
    %77 = arith.mulf %71, %76 : vector<8x64xf32>
    %78 = arith.addf %73, %77 : vector<8x64xf32>
    %79 = math.tanh %78 : vector<8x64xf32>
    %cst_26 = arith.constant 1.000000e+00 : f32
    %80 = vector.broadcast %cst_26 : f32 to vector<8x64xf32>
    %81 = arith.subf %80, %72 : vector<8x64xf32>
    %82 = arith.mulf %81, %79 : vector<8x64xf32>
    %83 = arith.mulf %72, %59 : vector<8x64xf32>
    %84 = arith.addf %82, %83 : vector<8x64xf32>
    %85 = vector.extract_strided_slice %31 {offsets = [16, 0], sizes = [8, 192], strides = [1, 1]} : vector<64x192xf32> to vector<8x192xf32>
    %86 = arith.truncf %84 : vector<8x64xf32> to vector<8x64xbf16>
    %cst_27 = arith.constant dense<0.000000e+00> : vector<8x192xf32>
    %87 = tpu.matmul %86, %32, %cst_27 {dimension_numbers = #tpu.dot_dimension_numbers<[1], [0], [0], [1], [0, 0, 1, 1], [], []>} : vector<8x64xbf16>, vector<64x192xbf16>, vector<8x192xf32> -> vector<8x192xf32>
    %88 = vector.extract_strided_slice %85 {offsets = [0, 0], sizes = [8, 128], strides = [1, 1]} : vector<8x192xf32> to vector<8x128xf32>
    %89 = vector.extract_strided_slice %87 {offsets = [0, 0], sizes = [8, 128], strides = [1, 1]} : vector<8x192xf32> to vector<8x128xf32>
    %90 = arith.addf %88, %89 : vector<8x128xf32>
    %91 = arith.negf %90 : vector<8x128xf32>
    %92 = math.exp %91 : vector<8x128xf32>
    %cst_28 = arith.constant 1.000000e+00 : f32
    %93 = vector.broadcast %cst_28 : f32 to vector<8x128xf32>
    %94 = arith.addf %93, %92 : vector<8x128xf32>
    %95 = arith.divf %93, %94 : vector<8x128xf32>
    %96 = vector.extract_strided_slice %95 {offsets = [0, 0], sizes = [8, 64], strides = [1, 1]} : vector<8x128xf32> to vector<8x64xf32>
    %97 = vector.extract_strided_slice %95 {offsets = [0, 64], sizes = [8, 64], strides = [1, 1]} : vector<8x128xf32> to vector<8x64xf32>
    %98 = vector.extract_strided_slice %85 {offsets = [0, 128], sizes = [8, 64], strides = [1, 1]} : vector<8x192xf32> to vector<8x64xf32>
    %99 = vector.extract_strided_slice %87 {offsets = [0, 128], sizes = [8, 64], strides = [1, 1]} : vector<8x192xf32> to vector<8x64xf32>
    %100 = vector.broadcast %33 : vector<1x64xf32> to vector<8x64xf32>
    %101 = arith.addf %99, %100 : vector<8x64xf32>
    %102 = arith.mulf %96, %101 : vector<8x64xf32>
    %103 = arith.addf %98, %102 : vector<8x64xf32>
    %104 = math.tanh %103 : vector<8x64xf32>
    %cst_29 = arith.constant 1.000000e+00 : f32
    %105 = vector.broadcast %cst_29 : f32 to vector<8x64xf32>
    %106 = arith.subf %105, %97 : vector<8x64xf32>
    %107 = arith.mulf %106, %104 : vector<8x64xf32>
    %108 = arith.mulf %97, %84 : vector<8x64xf32>
    %109 = arith.addf %107, %108 : vector<8x64xf32>
    %110 = vector.extract_strided_slice %31 {offsets = [24, 0], sizes = [8, 192], strides = [1, 1]} : vector<64x192xf32> to vector<8x192xf32>
    %111 = arith.truncf %109 : vector<8x64xf32> to vector<8x64xbf16>
    %cst_30 = arith.constant dense<0.000000e+00> : vector<8x192xf32>
    %112 = tpu.matmul %111, %32, %cst_30 {dimension_numbers = #tpu.dot_dimension_numbers<[1], [0], [0], [1], [0, 0, 1, 1], [], []>} : vector<8x64xbf16>, vector<64x192xbf16>, vector<8x192xf32> -> vector<8x192xf32>
    %113 = vector.extract_strided_slice %110 {offsets = [0, 0], sizes = [8, 128], strides = [1, 1]} : vector<8x192xf32> to vector<8x128xf32>
    %114 = vector.extract_strided_slice %112 {offsets = [0, 0], sizes = [8, 128], strides = [1, 1]} : vector<8x192xf32> to vector<8x128xf32>
    %115 = arith.addf %113, %114 : vector<8x128xf32>
    %116 = arith.negf %115 : vector<8x128xf32>
    %117 = math.exp %116 : vector<8x128xf32>
    %cst_31 = arith.constant 1.000000e+00 : f32
    %118 = vector.broadcast %cst_31 : f32 to vector<8x128xf32>
    %119 = arith.addf %118, %117 : vector<8x128xf32>
    %120 = arith.divf %118, %119 : vector<8x128xf32>
    %121 = vector.extract_strided_slice %120 {offsets = [0, 0], sizes = [8, 64], strides = [1, 1]} : vector<8x128xf32> to vector<8x64xf32>
    %122 = vector.extract_strided_slice %120 {offsets = [0, 64], sizes = [8, 64], strides = [1, 1]} : vector<8x128xf32> to vector<8x64xf32>
    %123 = vector.extract_strided_slice %110 {offsets = [0, 128], sizes = [8, 64], strides = [1, 1]} : vector<8x192xf32> to vector<8x64xf32>
    %124 = vector.extract_strided_slice %112 {offsets = [0, 128], sizes = [8, 64], strides = [1, 1]} : vector<8x192xf32> to vector<8x64xf32>
    %125 = vector.broadcast %33 : vector<1x64xf32> to vector<8x64xf32>
    %126 = arith.addf %124, %125 : vector<8x64xf32>
    %127 = arith.mulf %121, %126 : vector<8x64xf32>
    %128 = arith.addf %123, %127 : vector<8x64xf32>
    %129 = math.tanh %128 : vector<8x64xf32>
    %cst_32 = arith.constant 1.000000e+00 : f32
    %130 = vector.broadcast %cst_32 : f32 to vector<8x64xf32>
    %131 = arith.subf %130, %122 : vector<8x64xf32>
    %132 = arith.mulf %131, %129 : vector<8x64xf32>
    %133 = arith.mulf %122, %109 : vector<8x64xf32>
    %134 = arith.addf %132, %133 : vector<8x64xf32>
    %135 = vector.extract_strided_slice %31 {offsets = [32, 0], sizes = [8, 192], strides = [1, 1]} : vector<64x192xf32> to vector<8x192xf32>
    %136 = arith.truncf %134 : vector<8x64xf32> to vector<8x64xbf16>
    %cst_33 = arith.constant dense<0.000000e+00> : vector<8x192xf32>
    %137 = tpu.matmul %136, %32, %cst_33 {dimension_numbers = #tpu.dot_dimension_numbers<[1], [0], [0], [1], [0, 0, 1, 1], [], []>} : vector<8x64xbf16>, vector<64x192xbf16>, vector<8x192xf32> -> vector<8x192xf32>
    %138 = vector.extract_strided_slice %135 {offsets = [0, 0], sizes = [8, 128], strides = [1, 1]} : vector<8x192xf32> to vector<8x128xf32>
    %139 = vector.extract_strided_slice %137 {offsets = [0, 0], sizes = [8, 128], strides = [1, 1]} : vector<8x192xf32> to vector<8x128xf32>
    %140 = arith.addf %138, %139 : vector<8x128xf32>
    %141 = arith.negf %140 : vector<8x128xf32>
    %142 = math.exp %141 : vector<8x128xf32>
    %cst_34 = arith.constant 1.000000e+00 : f32
    %143 = vector.broadcast %cst_34 : f32 to vector<8x128xf32>
    %144 = arith.addf %143, %142 : vector<8x128xf32>
    %145 = arith.divf %143, %144 : vector<8x128xf32>
    %146 = vector.extract_strided_slice %145 {offsets = [0, 0], sizes = [8, 64], strides = [1, 1]} : vector<8x128xf32> to vector<8x64xf32>
    %147 = vector.extract_strided_slice %145 {offsets = [0, 64], sizes = [8, 64], strides = [1, 1]} : vector<8x128xf32> to vector<8x64xf32>
    %148 = vector.extract_strided_slice %135 {offsets = [0, 128], sizes = [8, 64], strides = [1, 1]} : vector<8x192xf32> to vector<8x64xf32>
    %149 = vector.extract_strided_slice %137 {offsets = [0, 128], sizes = [8, 64], strides = [1, 1]} : vector<8x192xf32> to vector<8x64xf32>
    %150 = vector.broadcast %33 : vector<1x64xf32> to vector<8x64xf32>
    %151 = arith.addf %149, %150 : vector<8x64xf32>
    %152 = arith.mulf %146, %151 : vector<8x64xf32>
    %153 = arith.addf %148, %152 : vector<8x64xf32>
    %154 = math.tanh %153 : vector<8x64xf32>
    %cst_35 = arith.constant 1.000000e+00 : f32
    %155 = vector.broadcast %cst_35 : f32 to vector<8x64xf32>
    %156 = arith.subf %155, %147 : vector<8x64xf32>
    %157 = arith.mulf %156, %154 : vector<8x64xf32>
    %158 = arith.mulf %147, %134 : vector<8x64xf32>
    %159 = arith.addf %157, %158 : vector<8x64xf32>
    %160 = vector.extract_strided_slice %31 {offsets = [40, 0], sizes = [8, 192], strides = [1, 1]} : vector<64x192xf32> to vector<8x192xf32>
    %161 = arith.truncf %159 : vector<8x64xf32> to vector<8x64xbf16>
    %cst_36 = arith.constant dense<0.000000e+00> : vector<8x192xf32>
    %162 = tpu.matmul %161, %32, %cst_36 {dimension_numbers = #tpu.dot_dimension_numbers<[1], [0], [0], [1], [0, 0, 1, 1], [], []>} : vector<8x64xbf16>, vector<64x192xbf16>, vector<8x192xf32> -> vector<8x192xf32>
    %163 = vector.extract_strided_slice %160 {offsets = [0, 0], sizes = [8, 128], strides = [1, 1]} : vector<8x192xf32> to vector<8x128xf32>
    %164 = vector.extract_strided_slice %162 {offsets = [0, 0], sizes = [8, 128], strides = [1, 1]} : vector<8x192xf32> to vector<8x128xf32>
    %165 = arith.addf %163, %164 : vector<8x128xf32>
    %166 = arith.negf %165 : vector<8x128xf32>
    %167 = math.exp %166 : vector<8x128xf32>
    %cst_37 = arith.constant 1.000000e+00 : f32
    %168 = vector.broadcast %cst_37 : f32 to vector<8x128xf32>
    %169 = arith.addf %168, %167 : vector<8x128xf32>
    %170 = arith.divf %168, %169 : vector<8x128xf32>
    %171 = vector.extract_strided_slice %170 {offsets = [0, 0], sizes = [8, 64], strides = [1, 1]} : vector<8x128xf32> to vector<8x64xf32>
    %172 = vector.extract_strided_slice %170 {offsets = [0, 64], sizes = [8, 64], strides = [1, 1]} : vector<8x128xf32> to vector<8x64xf32>
    %173 = vector.extract_strided_slice %160 {offsets = [0, 128], sizes = [8, 64], strides = [1, 1]} : vector<8x192xf32> to vector<8x64xf32>
    %174 = vector.extract_strided_slice %162 {offsets = [0, 128], sizes = [8, 64], strides = [1, 1]} : vector<8x192xf32> to vector<8x64xf32>
    %175 = vector.broadcast %33 : vector<1x64xf32> to vector<8x64xf32>
    %176 = arith.addf %174, %175 : vector<8x64xf32>
    %177 = arith.mulf %171, %176 : vector<8x64xf32>
    %178 = arith.addf %173, %177 : vector<8x64xf32>
    %179 = math.tanh %178 : vector<8x64xf32>
    %cst_38 = arith.constant 1.000000e+00 : f32
    %180 = vector.broadcast %cst_38 : f32 to vector<8x64xf32>
    %181 = arith.subf %180, %172 : vector<8x64xf32>
    %182 = arith.mulf %181, %179 : vector<8x64xf32>
    %183 = arith.mulf %172, %159 : vector<8x64xf32>
    %184 = arith.addf %182, %183 : vector<8x64xf32>
    %185 = vector.extract_strided_slice %31 {offsets = [48, 0], sizes = [8, 192], strides = [1, 1]} : vector<64x192xf32> to vector<8x192xf32>
    %186 = arith.truncf %184 : vector<8x64xf32> to vector<8x64xbf16>
    %cst_39 = arith.constant dense<0.000000e+00> : vector<8x192xf32>
    %187 = tpu.matmul %186, %32, %cst_39 {dimension_numbers = #tpu.dot_dimension_numbers<[1], [0], [0], [1], [0, 0, 1, 1], [], []>} : vector<8x64xbf16>, vector<64x192xbf16>, vector<8x192xf32> -> vector<8x192xf32>
    %188 = vector.extract_strided_slice %185 {offsets = [0, 0], sizes = [8, 128], strides = [1, 1]} : vector<8x192xf32> to vector<8x128xf32>
    %189 = vector.extract_strided_slice %187 {offsets = [0, 0], sizes = [8, 128], strides = [1, 1]} : vector<8x192xf32> to vector<8x128xf32>
    %190 = arith.addf %188, %189 : vector<8x128xf32>
    %191 = arith.negf %190 : vector<8x128xf32>
    %192 = math.exp %191 : vector<8x128xf32>
    %cst_40 = arith.constant 1.000000e+00 : f32
    %193 = vector.broadcast %cst_40 : f32 to vector<8x128xf32>
    %194 = arith.addf %193, %192 : vector<8x128xf32>
    %195 = arith.divf %193, %194 : vector<8x128xf32>
    %196 = vector.extract_strided_slice %195 {offsets = [0, 0], sizes = [8, 64], strides = [1, 1]} : vector<8x128xf32> to vector<8x64xf32>
    %197 = vector.extract_strided_slice %195 {offsets = [0, 64], sizes = [8, 64], strides = [1, 1]} : vector<8x128xf32> to vector<8x64xf32>
    %198 = vector.extract_strided_slice %185 {offsets = [0, 128], sizes = [8, 64], strides = [1, 1]} : vector<8x192xf32> to vector<8x64xf32>
    %199 = vector.extract_strided_slice %187 {offsets = [0, 128], sizes = [8, 64], strides = [1, 1]} : vector<8x192xf32> to vector<8x64xf32>
    %200 = vector.broadcast %33 : vector<1x64xf32> to vector<8x64xf32>
    %201 = arith.addf %199, %200 : vector<8x64xf32>
    %202 = arith.mulf %196, %201 : vector<8x64xf32>
    %203 = arith.addf %198, %202 : vector<8x64xf32>
    %204 = math.tanh %203 : vector<8x64xf32>
    %cst_41 = arith.constant 1.000000e+00 : f32
    %205 = vector.broadcast %cst_41 : f32 to vector<8x64xf32>
    %206 = arith.subf %205, %197 : vector<8x64xf32>
    %207 = arith.mulf %206, %204 : vector<8x64xf32>
    %208 = arith.mulf %197, %184 : vector<8x64xf32>
    %209 = arith.addf %207, %208 : vector<8x64xf32>
    %210 = vector.extract_strided_slice %31 {offsets = [56, 0], sizes = [8, 192], strides = [1, 1]} : vector<64x192xf32> to vector<8x192xf32>
    %211 = arith.truncf %209 : vector<8x64xf32> to vector<8x64xbf16>
    %cst_42 = arith.constant dense<0.000000e+00> : vector<8x192xf32>
    %212 = tpu.matmul %211, %32, %cst_42 {dimension_numbers = #tpu.dot_dimension_numbers<[1], [0], [0], [1], [0, 0, 1, 1], [], []>} : vector<8x64xbf16>, vector<64x192xbf16>, vector<8x192xf32> -> vector<8x192xf32>
    %213 = vector.extract_strided_slice %210 {offsets = [0, 0], sizes = [8, 128], strides = [1, 1]} : vector<8x192xf32> to vector<8x128xf32>
    %214 = vector.extract_strided_slice %212 {offsets = [0, 0], sizes = [8, 128], strides = [1, 1]} : vector<8x192xf32> to vector<8x128xf32>
    %215 = arith.addf %213, %214 : vector<8x128xf32>
    %216 = arith.negf %215 : vector<8x128xf32>
    %217 = math.exp %216 : vector<8x128xf32>
    %cst_43 = arith.constant 1.000000e+00 : f32
    %218 = vector.broadcast %cst_43 : f32 to vector<8x128xf32>
    %219 = arith.addf %218, %217 : vector<8x128xf32>
    %220 = arith.divf %218, %219 : vector<8x128xf32>
    %221 = vector.extract_strided_slice %220 {offsets = [0, 0], sizes = [8, 64], strides = [1, 1]} : vector<8x128xf32> to vector<8x64xf32>
    %222 = vector.extract_strided_slice %220 {offsets = [0, 64], sizes = [8, 64], strides = [1, 1]} : vector<8x128xf32> to vector<8x64xf32>
    %223 = vector.extract_strided_slice %210 {offsets = [0, 128], sizes = [8, 64], strides = [1, 1]} : vector<8x192xf32> to vector<8x64xf32>
    %224 = vector.extract_strided_slice %212 {offsets = [0, 128], sizes = [8, 64], strides = [1, 1]} : vector<8x192xf32> to vector<8x64xf32>
    %225 = vector.broadcast %33 : vector<1x64xf32> to vector<8x64xf32>
    %226 = arith.addf %224, %225 : vector<8x64xf32>
    %227 = arith.mulf %221, %226 : vector<8x64xf32>
    %228 = arith.addf %223, %227 : vector<8x64xf32>
    %229 = math.tanh %228 : vector<8x64xf32>
    %cst_44 = arith.constant 1.000000e+00 : f32
    %230 = vector.broadcast %cst_44 : f32 to vector<8x64xf32>
    %231 = arith.subf %230, %222 : vector<8x64xf32>
    %232 = arith.mulf %231, %229 : vector<8x64xf32>
    %233 = arith.mulf %222, %209 : vector<8x64xf32>
    %234 = arith.addf %232, %233 : vector<8x64xf32>
    %235 = vector.extract_strided_slice %234 {offsets = [0, 32], sizes = [8, 32], strides = [1, 1]} : vector<8x64xf32> to vector<8x32xf32>
    %236 = vector.broadcast %1 : vector<8x1xf32> to vector<8x32xf32>
    %237 = arith.mulf %236, %235 : vector<8x32xf32>
    %238 = vector.extract_strided_slice %234 {offsets = [0, 0], sizes = [8, 32], strides = [1, 1]} : vector<8x64xf32> to vector<8x32xf32>
    %239 = vector.broadcast %4 : vector<8x1xf32> to vector<8x32xf32>
    %240 = arith.mulf %239, %238 : vector<8x32xf32>
    %241 = arith.addf %237, %240 : vector<8x32xf32>
    %cst_45 = arith.constant 0.000000e+00 : f32
    %242 = vector.broadcast %cst_45 : f32 to vector<8x32xf32>
    %243 = arith.cmpf ogt, %241, %242 : vector<8x32xf32>
    %cst_46 = arith.constant 1.000000e-01 : f32
    %244 = vector.broadcast %cst_46 : f32 to vector<8x32xf32>
    %245 = arith.mulf %244, %241 : vector<8x32xf32>
    %246 = arith.select %243, %241, %245 : vector<8x32xi1>, vector<8x32xf32>
    %c0_47 = arith.constant 0 : index
    %c0_48 = arith.constant 0 : index
    %247 = vector.load %arg14[%c0_47, %c0_48] : memref<8x32xf32, #tpu.memory_space<vmem>>, vector<8x32xf32>
    tpu.vector_store %arg14[%c0_47, %c0_48], %246 {strides = array<i32>} : memref<8x32xf32, #tpu.memory_space<vmem>>, vector<8x32xf32>,
    %248 = tpu.concatenate %246, %246 in 1 : vector<8x32xf32>, vector<8x32xf32> -> vector<8x64xf32>
    %249 = arith.truncf %248 : vector<8x64xf32> to vector<8x64xbf16>
    %c0_49 = arith.constant 0 : index
    %c0_50 = arith.constant 0 : index
    %250 = vector.load %arg9[%c0_49, %c0_50] : memref<64x256xbf16, #tpu.memory_space<vmem>>, vector<64x256xbf16>
    %cst_51 = arith.constant dense<0.000000e+00> : vector<8x256xf32>
    %251 = tpu.matmul %249, %250, %cst_51 {dimension_numbers = #tpu.dot_dimension_numbers<[1], [0], [0], [1], [0, 0, 1, 1], [], []>} : vector<8x64xbf16>, vector<64x256xbf16>, vector<8x256xf32> -> vector<8x256xf32>
    %c0_52 = arith.constant 0 : index
    %c0_53 = arith.constant 0 : index
    %252 = vector.load %arg10[%c0_52, %c0_53] : memref<1x256xf32, #tpu.memory_space<vmem>>, vector<1x256xf32>
    %253 = vector.broadcast %252 : vector<1x256xf32> to vector<8x256xf32>
    %254 = arith.addf %251, %253 : vector<8x256xf32>
    %c0_54 = arith.constant 0 : index
    %c0_55 = arith.constant 0 : index
    %255 = vector.load %arg11[%c0_54, %c0_55] : memref<64x256xbf16, #tpu.memory_space<vmem>>, vector<64x256xbf16>
    %c0_56 = arith.constant 0 : index
    %c0_57 = arith.constant 0 : index
    %256 = vector.load %arg12[%c0_56, %c0_57] : memref<128x256xbf16, #tpu.memory_space<vmem>>, vector<128x256xbf16>
    %c0_58 = arith.constant 0 : index
    %c0_59 = arith.constant 0 : index
    %257 = vector.load %arg13[%c0_58, %c0_59] : memref<1x256xf32, #tpu.memory_space<vmem>>, vector<1x256xf32>
    %cst_60 = arith.constant 0.000000e+00 : f32
    %258 = vector.broadcast %cst_60 : f32 to vector<8x64xf32>
    %259 = arith.truncf %258 : vector<8x64xf32> to vector<8x64xbf16>
    %cst_61 = arith.constant dense<0.000000e+00> : vector<8x256xf32>
    %260 = tpu.matmul %259, %255, %cst_61 {dimension_numbers = #tpu.dot_dimension_numbers<[1], [0], [0], [1], [0, 0, 1, 1], [], []>} : vector<8x64xbf16>, vector<64x256xbf16>, vector<8x256xf32> -> vector<8x256xf32>
    %261 = arith.addf %254, %260 : vector<8x256xf32>
    %262 = vector.extract_strided_slice %261 {offsets = [0, 0], sizes = [8, 192], strides = [1, 1]} : vector<8x256xf32> to vector<8x192xf32>
    %263 = arith.negf %262 : vector<8x192xf32>
    %264 = math.exp %263 : vector<8x192xf32>
    %cst_62 = arith.constant 1.000000e+00 : f32
    %265 = vector.broadcast %cst_62 : f32 to vector<8x192xf32>
    %266 = arith.addf %265, %264 : vector<8x192xf32>
    %267 = arith.divf %265, %266 : vector<8x192xf32>
    %268 = vector.extract_strided_slice %261 {offsets = [0, 192], sizes = [8, 64], strides = [1, 1]} : vector<8x256xf32> to vector<8x64xf32>
    %269 = math.tanh %268 : vector<8x64xf32>
    %270 = vector.extract_strided_slice %267 {offsets = [0, 0], sizes = [8, 64], strides = [1, 1]} : vector<8x192xf32> to vector<8x64xf32>
    %271 = vector.extract_strided_slice %267 {offsets = [0, 64], sizes = [8, 64], strides = [1, 1]} : vector<8x192xf32> to vector<8x64xf32>
    %272 = vector.extract_strided_slice %267 {offsets = [0, 128], sizes = [8, 64], strides = [1, 1]} : vector<8x192xf32> to vector<8x64xf32>
    %273 = arith.mulf %271, %258 : vector<8x64xf32>
    %274 = arith.mulf %270, %269 : vector<8x64xf32>
    %275 = arith.addf %273, %274 : vector<8x64xf32>
    %276 = math.tanh %275 : vector<8x64xf32>
    %277 = arith.mulf %272, %276 : vector<8x64xf32>
    %278 = tpu.concatenate %277, %258 in 1 : vector<8x64xf32>, vector<8x64xf32> -> vector<8x128xf32>
    %279 = arith.truncf %278 : vector<8x128xf32> to vector<8x128xbf16>
    %cst_63 = arith.constant dense<0.000000e+00> : vector<8x256xf32>
    %280 = tpu.matmul %279, %256, %cst_63 {dimension_numbers = #tpu.dot_dimension_numbers<[1], [0], [0], [1], [0, 0, 1, 1], [], []>} : vector<8x128xbf16>, vector<128x256xbf16>, vector<8x256xf32> -> vector<8x256xf32>
    %281 = vector.broadcast %257 : vector<1x256xf32> to vector<8x256xf32>
    %282 = arith.addf %280, %281 : vector<8x256xf32>
    %283 = vector.extract_strided_slice %282 {offsets = [0, 0], sizes = [8, 192], strides = [1, 1]} : vector<8x256xf32> to vector<8x192xf32>
    %284 = arith.negf %283 : vector<8x192xf32>
    %285 = math.exp %284 : vector<8x192xf32>
    %cst_64 = arith.constant 1.000000e+00 : f32
    %286 = vector.broadcast %cst_64 : f32 to vector<8x192xf32>
    %287 = arith.addf %286, %285 : vector<8x192xf32>
    %288 = arith.divf %286, %287 : vector<8x192xf32>
    %289 = vector.extract_strided_slice %282 {offsets = [0, 192], sizes = [8, 64], strides = [1, 1]} : vector<8x256xf32> to vector<8x64xf32>
    %290 = math.tanh %289 : vector<8x64xf32>
    %291 = vector.extract_strided_slice %288 {offsets = [0, 0], sizes = [8, 64], strides = [1, 1]} : vector<8x192xf32> to vector<8x64xf32>
    %292 = vector.extract_strided_slice %288 {offsets = [0, 64], sizes = [8, 64], strides = [1, 1]} : vector<8x192xf32> to vector<8x64xf32>
    %293 = vector.extract_strided_slice %288 {offsets = [0, 128], sizes = [8, 64], strides = [1, 1]} : vector<8x192xf32> to vector<8x64xf32>
    %294 = arith.mulf %292, %258 : vector<8x64xf32>
    %295 = arith.mulf %291, %290 : vector<8x64xf32>
    %296 = arith.addf %294, %295 : vector<8x64xf32>
    %297 = math.tanh %296 : vector<8x64xf32>
    %298 = arith.mulf %293, %297 : vector<8x64xf32>
    %299 = vector.extract_strided_slice %298 {offsets = [0, 32], sizes = [8, 32], strides = [1, 1]} : vector<8x64xf32> to vector<8x32xf32>
    %300 = vector.broadcast %1 : vector<8x1xf32> to vector<8x32xf32>
    %301 = arith.mulf %300, %299 : vector<8x32xf32>
    %302 = vector.extract_strided_slice %298 {offsets = [0, 0], sizes = [8, 32], strides = [1, 1]} : vector<8x64xf32> to vector<8x32xf32>
    %303 = vector.broadcast %4 : vector<8x1xf32> to vector<8x32xf32>
    %304 = arith.mulf %303, %302 : vector<8x32xf32>
    %305 = arith.addf %301, %304 : vector<8x32xf32>
    %306 = arith.truncf %277 : vector<8x64xf32> to vector<8x64xbf16>
    %cst_65 = arith.constant dense<0.000000e+00> : vector<8x256xf32>
    %307 = tpu.matmul %306, %255, %cst_65 {dimension_numbers = #tpu.dot_dimension_numbers<[1], [0], [0], [1], [0, 0, 1, 1], [], []>} : vector<8x64xbf16>, vector<64x256xbf16>, vector<8x256xf32> -> vector<8x256xf32>
    %308 = arith.addf %254, %307 : vector<8x256xf32>
    %309 = vector.extract_strided_slice %308 {offsets = [0, 0], sizes = [8, 192], strides = [1, 1]} : vector<8x256xf32> to vector<8x192xf32>
    %310 = arith.negf %309 : vector<8x192xf32>
    %311 = math.exp %310 : vector<8x192xf32>
    %cst_66 = arith.constant 1.000000e+00 : f32
    %312 = vector.broadcast %cst_66 : f32 to vector<8x192xf32>
    %313 = arith.addf %312, %311 : vector<8x192xf32>
    %314 = arith.divf %312, %313 : vector<8x192xf32>
    %315 = vector.extract_strided_slice %308 {offsets = [0, 192], sizes = [8, 64], strides = [1, 1]} : vector<8x256xf32> to vector<8x64xf32>
    %316 = math.tanh %315 : vector<8x64xf32>
    %317 = vector.extract_strided_slice %314 {offsets = [0, 0], sizes = [8, 64], strides = [1, 1]} : vector<8x192xf32> to vector<8x64xf32>
    %318 = vector.extract_strided_slice %314 {offsets = [0, 64], sizes = [8, 64], strides = [1, 1]} : vector<8x192xf32> to vector<8x64xf32>
    %319 = vector.extract_strided_slice %314 {offsets = [0, 128], sizes = [8, 64], strides = [1, 1]} : vector<8x192xf32> to vector<8x64xf32>
    %320 = arith.mulf %318, %275 : vector<8x64xf32>
    %321 = arith.mulf %317, %316 : vector<8x64xf32>
    %322 = arith.addf %320, %321 : vector<8x64xf32>
    %323 = math.tanh %322 : vector<8x64xf32>
    %324 = arith.mulf %319, %323 : vector<8x64xf32>
    %325 = tpu.concatenate %324, %298 in 1 : vector<8x64xf32>, vector<8x64xf32> -> vector<8x128xf32>
    %326 = arith.truncf %325 : vector<8x128xf32> to vector<8x128xbf16>
    %cst_67 = arith.constant dense<0.000000e+00> : vector<8x256xf32>
    %327 = tpu.matmul %326, %256, %cst_67 {dimension_numbers = #tpu.dot_dimension_numbers<[1], [0], [0], [1], [0, 0, 1, 1], [], []>} : vector<8x128xbf16>, vector<128x256xbf16>, vector<8x256xf32> -> vector<8x256xf32>
    %328 = vector.broadcast %257 : vector<1x256xf32> to vector<8x256xf32>
    %329 = arith.addf %327, %328 : vector<8x256xf32>
    %330 = vector.extract_strided_slice %329 {offsets = [0, 0], sizes = [8, 192], strides = [1, 1]} : vector<8x256xf32> to vector<8x192xf32>
    %331 = arith.negf %330 : vector<8x192xf32>
    %332 = math.exp %331 : vector<8x192xf32>
    %cst_68 = arith.constant 1.000000e+00 : f32
    %333 = vector.broadcast %cst_68 : f32 to vector<8x192xf32>
    %334 = arith.addf %333, %332 : vector<8x192xf32>
    %335 = arith.divf %333, %334 : vector<8x192xf32>
    %336 = vector.extract_strided_slice %329 {offsets = [0, 192], sizes = [8, 64], strides = [1, 1]} : vector<8x256xf32> to vector<8x64xf32>
    %337 = math.tanh %336 : vector<8x64xf32>
    %338 = vector.extract_strided_slice %335 {offsets = [0, 0], sizes = [8, 64], strides = [1, 1]} : vector<8x192xf32> to vector<8x64xf32>
    %339 = vector.extract_strided_slice %335 {offsets = [0, 64], sizes = [8, 64], strides = [1, 1]} : vector<8x192xf32> to vector<8x64xf32>
    %340 = vector.extract_strided_slice %335 {offsets = [0, 128], sizes = [8, 64], strides = [1, 1]} : vector<8x192xf32> to vector<8x64xf32>
    %341 = arith.mulf %339, %296 : vector<8x64xf32>
    %342 = arith.mulf %338, %337 : vector<8x64xf32>
    %343 = arith.addf %341, %342 : vector<8x64xf32>
    %344 = math.tanh %343 : vector<8x64xf32>
    %345 = arith.mulf %340, %344 : vector<8x64xf32>
    %346 = vector.extract_strided_slice %345 {offsets = [0, 32], sizes = [8, 32], strides = [1, 1]} : vector<8x64xf32> to vector<8x32xf32>
    %347 = vector.broadcast %1 : vector<8x1xf32> to vector<8x32xf32>
    %348 = arith.mulf %347, %346 : vector<8x32xf32>
    %349 = vector.extract_strided_slice %345 {offsets = [0, 0], sizes = [8, 32], strides = [1, 1]} : vector<8x64xf32> to vector<8x32xf32>
    %350 = vector.broadcast %4 : vector<8x1xf32> to vector<8x32xf32>
    %351 = arith.mulf %350, %349 : vector<8x32xf32>
    %352 = arith.addf %348, %351 : vector<8x32xf32>
    %353 = arith.truncf %324 : vector<8x64xf32> to vector<8x64xbf16>
    %cst_69 = arith.constant dense<0.000000e+00> : vector<8x256xf32>
    %354 = tpu.matmul %353, %255, %cst_69 {dimension_numbers = #tpu.dot_dimension_numbers<[1], [0], [0], [1], [0, 0, 1, 1], [], []>} : vector<8x64xbf16>, vector<64x256xbf16>, vector<8x256xf32> -> vector<8x256xf32>
    %355 = arith.addf %254, %354 : vector<8x256xf32>
    %356 = vector.extract_strided_slice %355 {offsets = [0, 0], sizes = [8, 192], strides = [1, 1]} : vector<8x256xf32> to vector<8x192xf32>
    %357 = arith.negf %356 : vector<8x192xf32>
    %358 = math.exp %357 : vector<8x192xf32>
    %cst_70 = arith.constant 1.000000e+00 : f32
    %359 = vector.broadcast %cst_70 : f32 to vector<8x192xf32>
    %360 = arith.addf %359, %358 : vector<8x192xf32>
    %361 = arith.divf %359, %360 : vector<8x192xf32>
    %362 = vector.extract_strided_slice %355 {offsets = [0, 192], sizes = [8, 64], strides = [1, 1]} : vector<8x256xf32> to vector<8x64xf32>
    %363 = math.tanh %362 : vector<8x64xf32>
    %364 = vector.extract_strided_slice %361 {offsets = [0, 0], sizes = [8, 64], strides = [1, 1]} : vector<8x192xf32> to vector<8x64xf32>
    %365 = vector.extract_strided_slice %361 {offsets = [0, 64], sizes = [8, 64], strides = [1, 1]} : vector<8x192xf32> to vector<8x64xf32>
    %366 = vector.extract_strided_slice %361 {offsets = [0, 128], sizes = [8, 64], strides = [1, 1]} : vector<8x192xf32> to vector<8x64xf32>
    %367 = arith.mulf %365, %322 : vector<8x64xf32>
    %368 = arith.mulf %364, %363 : vector<8x64xf32>
    %369 = arith.addf %367, %368 : vector<8x64xf32>
    %370 = math.tanh %369 : vector<8x64xf32>
    %371 = arith.mulf %366, %370 : vector<8x64xf32>
    %372 = tpu.concatenate %371, %345 in 1 : vector<8x64xf32>, vector<8x64xf32> -> vector<8x128xf32>
    %373 = arith.truncf %372 : vector<8x128xf32> to vector<8x128xbf16>
    %cst_71 = arith.constant dense<0.000000e+00> : vector<8x256xf32>
    %374 = tpu.matmul %373, %256, %cst_71 {dimension_numbers = #tpu.dot_dimension_numbers<[1], [0], [0], [1], [0, 0, 1, 1], [], []>} : vector<8x128xbf16>, vector<128x256xbf16>, vector<8x256xf32> -> vector<8x256xf32>
    %375 = vector.broadcast %257 : vector<1x256xf32> to vector<8x256xf32>
    %376 = arith.addf %374, %375 : vector<8x256xf32>
    %377 = vector.extract_strided_slice %376 {offsets = [0, 0], sizes = [8, 192], strides = [1, 1]} : vector<8x256xf32> to vector<8x192xf32>
    %378 = arith.negf %377 : vector<8x192xf32>
    %379 = math.exp %378 : vector<8x192xf32>
    %cst_72 = arith.constant 1.000000e+00 : f32
    %380 = vector.broadcast %cst_72 : f32 to vector<8x192xf32>
    %381 = arith.addf %380, %379 : vector<8x192xf32>
    %382 = arith.divf %380, %381 : vector<8x192xf32>
    %383 = vector.extract_strided_slice %376 {offsets = [0, 192], sizes = [8, 64], strides = [1, 1]} : vector<8x256xf32> to vector<8x64xf32>
    %384 = math.tanh %383 : vector<8x64xf32>
    %385 = vector.extract_strided_slice %382 {offsets = [0, 0], sizes = [8, 64], strides = [1, 1]} : vector<8x192xf32> to vector<8x64xf32>
    %386 = vector.extract_strided_slice %382 {offsets = [0, 64], sizes = [8, 64], strides = [1, 1]} : vector<8x192xf32> to vector<8x64xf32>
    %387 = vector.extract_strided_slice %382 {offsets = [0, 128], sizes = [8, 64], strides = [1, 1]} : vector<8x192xf32> to vector<8x64xf32>
    %388 = arith.mulf %386, %343 : vector<8x64xf32>
    %389 = arith.mulf %385, %384 : vector<8x64xf32>
    %390 = arith.addf %388, %389 : vector<8x64xf32>
    %391 = math.tanh %390 : vector<8x64xf32>
    %392 = arith.mulf %387, %391 : vector<8x64xf32>
    %393 = vector.extract_strided_slice %392 {offsets = [0, 32], sizes = [8, 32], strides = [1, 1]} : vector<8x64xf32> to vector<8x32xf32>
    %394 = vector.broadcast %1 : vector<8x1xf32> to vector<8x32xf32>
    %395 = arith.mulf %394, %393 : vector<8x32xf32>
    %396 = vector.extract_strided_slice %392 {offsets = [0, 0], sizes = [8, 32], strides = [1, 1]} : vector<8x64xf32> to vector<8x32xf32>
    %397 = vector.broadcast %4 : vector<8x1xf32> to vector<8x32xf32>
    %398 = arith.mulf %397, %396 : vector<8x32xf32>
    %399 = arith.addf %395, %398 : vector<8x32xf32>
    %400 = arith.truncf %371 : vector<8x64xf32> to vector<8x64xbf16>
    %cst_73 = arith.constant dense<0.000000e+00> : vector<8x256xf32>
    %401 = tpu.matmul %400, %255, %cst_73 {dimension_numbers = #tpu.dot_dimension_numbers<[1], [0], [0], [1], [0, 0, 1, 1], [], []>} : vector<8x64xbf16>, vector<64x256xbf16>, vector<8x256xf32> -> vector<8x256xf32>
    %402 = arith.addf %254, %401 : vector<8x256xf32>
    %403 = vector.extract_strided_slice %402 {offsets = [0, 0], sizes = [8, 192], strides = [1, 1]} : vector<8x256xf32> to vector<8x192xf32>
    %404 = arith.negf %403 : vector<8x192xf32>
    %405 = math.exp %404 : vector<8x192xf32>
    %cst_74 = arith.constant 1.000000e+00 : f32
    %406 = vector.broadcast %cst_74 : f32 to vector<8x192xf32>
    %407 = arith.addf %406, %405 : vector<8x192xf32>
    %408 = arith.divf %406, %407 : vector<8x192xf32>
    %409 = vector.extract_strided_slice %402 {offsets = [0, 192], sizes = [8, 64], strides = [1, 1]} : vector<8x256xf32> to vector<8x64xf32>
    %410 = math.tanh %409 : vector<8x64xf32>
    %411 = vector.extract_strided_slice %408 {offsets = [0, 0], sizes = [8, 64], strides = [1, 1]} : vector<8x192xf32> to vector<8x64xf32>
    %412 = vector.extract_strided_slice %408 {offsets = [0, 64], sizes = [8, 64], strides = [1, 1]} : vector<8x192xf32> to vector<8x64xf32>
    %413 = vector.extract_strided_slice %408 {offsets = [0, 128], sizes = [8, 64], strides = [1, 1]} : vector<8x192xf32> to vector<8x64xf32>
    %414 = arith.mulf %412, %369 : vector<8x64xf32>
    %415 = arith.mulf %411, %410 : vector<8x64xf32>
    %416 = arith.addf %414, %415 : vector<8x64xf32>
    %417 = math.tanh %416 : vector<8x64xf32>
    %418 = arith.mulf %413, %417 : vector<8x64xf32>
    %419 = tpu.concatenate %418, %392 in 1 : vector<8x64xf32>, vector<8x64xf32> -> vector<8x128xf32>
    %420 = arith.truncf %419 : vector<8x128xf32> to vector<8x128xbf16>
    %cst_75 = arith.constant dense<0.000000e+00> : vector<8x256xf32>
    %421 = tpu.matmul %420, %256, %cst_75 {dimension_numbers = #tpu.dot_dimension_numbers<[1], [0], [0], [1], [0, 0, 1, 1], [], []>} : vector<8x128xbf16>, vector<128x256xbf16>, vector<8x256xf32> -> vector<8x256xf32>
    %422 = vector.broadcast %257 : vector<1x256xf32> to vector<8x256xf32>
    %423 = arith.addf %421, %422 : vector<8x256xf32>
    %424 = vector.extract_strided_slice %423 {offsets = [0, 0], sizes = [8, 192], strides = [1, 1]} : vector<8x256xf32> to vector<8x192xf32>
    %425 = arith.negf %424 : vector<8x192xf32>
    %426 = math.exp %425 : vector<8x192xf32>
    %cst_76 = arith.constant 1.000000e+00 : f32
    %427 = vector.broadcast %cst_76 : f32 to vector<8x192xf32>
    %428 = arith.addf %427, %426 : vector<8x192xf32>
    %429 = arith.divf %427, %428 : vector<8x192xf32>
    %430 = vector.extract_strided_slice %423 {offsets = [0, 192], sizes = [8, 64], strides = [1, 1]} : vector<8x256xf32> to vector<8x64xf32>
    %431 = math.tanh %430 : vector<8x64xf32>
    %432 = vector.extract_strided_slice %429 {offsets = [0, 0], sizes = [8, 64], strides = [1, 1]} : vector<8x192xf32> to vector<8x64xf32>
    %433 = vector.extract_strided_slice %429 {offsets = [0, 64], sizes = [8, 64], strides = [1, 1]} : vector<8x192xf32> to vector<8x64xf32>
    %434 = vector.extract_strided_slice %429 {offsets = [0, 128], sizes = [8, 64], strides = [1, 1]} : vector<8x192xf32> to vector<8x64xf32>
    %435 = arith.mulf %433, %390 : vector<8x64xf32>
    %436 = arith.mulf %432, %431 : vector<8x64xf32>
    %437 = arith.addf %435, %436 : vector<8x64xf32>
    %438 = math.tanh %437 : vector<8x64xf32>
    %439 = arith.mulf %434, %438 : vector<8x64xf32>
    %440 = vector.extract_strided_slice %439 {offsets = [0, 32], sizes = [8, 32], strides = [1, 1]} : vector<8x64xf32> to vector<8x32xf32>
    %441 = vector.broadcast %1 : vector<8x1xf32> to vector<8x32xf32>
    %442 = arith.mulf %441, %440 : vector<8x32xf32>
    %443 = vector.extract_strided_slice %439 {offsets = [0, 0], sizes = [8, 32], strides = [1, 1]} : vector<8x64xf32> to vector<8x32xf32>
    %444 = vector.broadcast %4 : vector<8x1xf32> to vector<8x32xf32>
    %445 = arith.mulf %444, %443 : vector<8x32xf32>
    %446 = arith.addf %442, %445 : vector<8x32xf32>
    %447 = arith.truncf %418 : vector<8x64xf32> to vector<8x64xbf16>
    %cst_77 = arith.constant dense<0.000000e+00> : vector<8x256xf32>
    %448 = tpu.matmul %447, %255, %cst_77 {dimension_numbers = #tpu.dot_dimension_numbers<[1], [0], [0], [1], [0, 0, 1, 1], [], []>} : vector<8x64xbf16>, vector<64x256xbf16>, vector<8x256xf32> -> vector<8x256xf32>
    %449 = arith.addf %254, %448 : vector<8x256xf32>
    %450 = vector.extract_strided_slice %449 {offsets = [0, 0], sizes = [8, 192], strides = [1, 1]} : vector<8x256xf32> to vector<8x192xf32>
    %451 = arith.negf %450 : vector<8x192xf32>
    %452 = math.exp %451 : vector<8x192xf32>
    %cst_78 = arith.constant 1.000000e+00 : f32
    %453 = vector.broadcast %cst_78 : f32 to vector<8x192xf32>
    %454 = arith.addf %453, %452 : vector<8x192xf32>
    %455 = arith.divf %453, %454 : vector<8x192xf32>
    %456 = vector.extract_strided_slice %449 {offsets = [0, 192], sizes = [8, 64], strides = [1, 1]} : vector<8x256xf32> to vector<8x64xf32>
    %457 = math.tanh %456 : vector<8x64xf32>
    %458 = vector.extract_strided_slice %455 {offsets = [0, 0], sizes = [8, 64], strides = [1, 1]} : vector<8x192xf32> to vector<8x64xf32>
    %459 = vector.extract_strided_slice %455 {offsets = [0, 64], sizes = [8, 64], strides = [1, 1]} : vector<8x192xf32> to vector<8x64xf32>
    %460 = vector.extract_strided_slice %455 {offsets = [0, 128], sizes = [8, 64], strides = [1, 1]} : vector<8x192xf32> to vector<8x64xf32>
    %461 = arith.mulf %459, %416 : vector<8x64xf32>
    %462 = arith.mulf %458, %457 : vector<8x64xf32>
    %463 = arith.addf %461, %462 : vector<8x64xf32>
    %464 = math.tanh %463 : vector<8x64xf32>
    %465 = arith.mulf %460, %464 : vector<8x64xf32>
    %466 = tpu.concatenate %465, %439 in 1 : vector<8x64xf32>, vector<8x64xf32> -> vector<8x128xf32>
    %467 = arith.truncf %466 : vector<8x128xf32> to vector<8x128xbf16>
    %cst_79 = arith.constant dense<0.000000e+00> : vector<8x256xf32>
    %468 = tpu.matmul %467, %256, %cst_79 {dimension_numbers = #tpu.dot_dimension_numbers<[1], [0], [0], [1], [0, 0, 1, 1], [], []>} : vector<8x128xbf16>, vector<128x256xbf16>, vector<8x256xf32> -> vector<8x256xf32>
    %469 = vector.broadcast %257 : vector<1x256xf32> to vector<8x256xf32>
    %470 = arith.addf %468, %469 : vector<8x256xf32>
    %471 = vector.extract_strided_slice %470 {offsets = [0, 0], sizes = [8, 192], strides = [1, 1]} : vector<8x256xf32> to vector<8x192xf32>
    %472 = arith.negf %471 : vector<8x192xf32>
    %473 = math.exp %472 : vector<8x192xf32>
    %cst_80 = arith.constant 1.000000e+00 : f32
    %474 = vector.broadcast %cst_80 : f32 to vector<8x192xf32>
    %475 = arith.addf %474, %473 : vector<8x192xf32>
    %476 = arith.divf %474, %475 : vector<8x192xf32>
    %477 = vector.extract_strided_slice %470 {offsets = [0, 192], sizes = [8, 64], strides = [1, 1]} : vector<8x256xf32> to vector<8x64xf32>
    %478 = math.tanh %477 : vector<8x64xf32>
    %479 = vector.extract_strided_slice %476 {offsets = [0, 0], sizes = [8, 64], strides = [1, 1]} : vector<8x192xf32> to vector<8x64xf32>
    %480 = vector.extract_strided_slice %476 {offsets = [0, 64], sizes = [8, 64], strides = [1, 1]} : vector<8x192xf32> to vector<8x64xf32>
    %481 = vector.extract_strided_slice %476 {offsets = [0, 128], sizes = [8, 64], strides = [1, 1]} : vector<8x192xf32> to vector<8x64xf32>
    %482 = arith.mulf %480, %437 : vector<8x64xf32>
    %483 = arith.mulf %479, %478 : vector<8x64xf32>
    %484 = arith.addf %482, %483 : vector<8x64xf32>
    %485 = math.tanh %484 : vector<8x64xf32>
    %486 = arith.mulf %481, %485 : vector<8x64xf32>
    %487 = vector.extract_strided_slice %486 {offsets = [0, 32], sizes = [8, 32], strides = [1, 1]} : vector<8x64xf32> to vector<8x32xf32>
    %488 = vector.broadcast %1 : vector<8x1xf32> to vector<8x32xf32>
    %489 = arith.mulf %488, %487 : vector<8x32xf32>
    %490 = vector.extract_strided_slice %486 {offsets = [0, 0], sizes = [8, 32], strides = [1, 1]} : vector<8x64xf32> to vector<8x32xf32>
    %491 = vector.broadcast %4 : vector<8x1xf32> to vector<8x32xf32>
    %492 = arith.mulf %491, %490 : vector<8x32xf32>
    %493 = arith.addf %489, %492 : vector<8x32xf32>
    %494 = tpu.concatenate %305, %352, %399, %446, %493 in 0 : vector<8x32xf32>, vector<8x32xf32>, vector<8x32xf32>, vector<8x32xf32>, vector<8x32xf32> -> vector<40x32xf32>
    %c0_81 = arith.constant 0 : index
    %c0_82 = arith.constant 0 : index
    %495 = vector.load %arg15[%c0_81, %c0_82] : memref<40x32xf32, #tpu.memory_space<vmem>>, vector<40x32xf32>
    tpu.vector_store %arg15[%c0_81, %c0_82], %494 {strides = array<i32>} : memref<40x32xf32, #tpu.memory_space<vmem>>, vector<40x32xf32>,
    return
  }
}

</mosaic_0001>

<llo_original>
// kernel: it_base_net_apply.1
$region0: #{it_base_net_apply.1}
  #allocation0 [shape = 'u32[]', space=smem, size = 0x4, offset = 0x4, fixed_abs, tag = 'smem constant byte address 0x4 - core index']
  #allocation1 [shape = 'u32[144,128]{1,0:T(1,128)}', space=vmem, size = 0x12000, scoped, tag = 'internal scratch']
  %s0 = inlined_call_operand.vmem [shape: f32[64,2], index: 0, kind: input, shape index: {}]
  %s1 = inlined_call_operand.vmem [shape: f32[8,1], index: 1, kind: input, shape index: {}]
  %s2 = inlined_call_operand.vmem [shape: f32[8,1], index: 2, kind: input, shape index: {}]
  %s3 = inlined_call_operand.vmem [shape: f32[2,32], index: 3, kind: input, shape index: {}]
  %s4 = inlined_call_operand.hbm [shape: f32[1,32], index: 4, kind: input, shape index: {}]
  %s5 = inlined_call_operand.hbm [shape: bf16[32,192], index: 5, kind: input, shape index: {}]
  %s6 = inlined_call_operand.hbm [shape: f32[1,192], index: 6, kind: input, shape index: {}]
  %s7 = inlined_call_operand.hbm [shape: bf16[64,192], index: 7, kind: input, shape index: {}]
  %s8 = inlined_call_operand.vmem [shape: f32[1,64], index: 8, kind: input, shape index: {}]
  %s9 = inlined_call_operand.hbm [shape: bf16[64,256], index: 9, kind: input, shape index: {}]
  %s10 = inlined_call_operand.hbm [shape: f32[1,256], index: 10, kind: input, shape index: {}]
  %s11 = inlined_call_operand.hbm [shape: bf16[64,256], index: 11, kind: input, shape index: {}]
  %s12 = inlined_call_operand.vmem [shape: bf16[128,256], index: 12, kind: input, shape index: {}]
  %s13 = inlined_call_operand.hbm [shape: f32[1,256], index: 13, kind: input, shape index: {}]
  %s14 = inlined_call_operand.hbm [shape: f32[8,32], index: 14, kind: output, shape index: {0}]
  %s15 = inlined_call_operand.vmem [shape: f32[40,32], index: 15, kind: output, shape index: {1}]
  %16 = xla_tuple %s14, %s15
  %s17 = sld [smem:[#allocation0]]
  $region106: #{it_base_net_apply.1} parent=0
    _
  %s19 = ssub.s32 1, %s17
  %s20 = scalar_select 0, %s19, %s17
  $region1: #{it_base_net_apply.1} parent=0
    #allocation2 [shape = 'u8[512]{0}', space=vmem, size = 0x400, scoped, tag = 'input window, operand 4, single buffered']
    #allocation3 [shape = 's32[1]{0}', space=sflag, size = 0x4, scoped, tag = 'scoped memory for it_base_net_apply.1']
    #allocation4 [shape = 's32[1]{0}', space=sflag, size = 0x4, scoped, tag = 'scoped memory for it_base_net_apply.1']
    #allocation5 [shape = 'u8[16384]{0}', space=vmem, size = 0x4000, scoped, tag = 'input window, operand 5, single buffered']
    #allocation6 [shape = 's32[1]{0}', space=sflag, size = 0x4, scoped, tag = 'scoped memory for it_base_net_apply.1']
    #allocation7 [shape = 'u8[1024]{0}', space=vmem, size = 0x400, scoped, tag = 'input window, operand 6, single buffered']
    #allocation8 [shape = 'u8[32768]{0}', space=vmem, size = 0x8000, scoped, tag = 'input window, operand 7, single buffered']
    #allocation9 [shape = 's32[1]{0}', space=sflag, size = 0x4, scoped, tag = 'scoped memory for it_base_net_apply.1']
    #allocation10 [shape = 'u8[32768]{0}', space=vmem, size = 0x8000, scoped, tag = 'input window, operand 9, single buffered']
    #allocation11 [shape = 'u8[1024]{0}', space=vmem, size = 0x400, scoped, tag = 'input window, operand 10, single buffered']
    #allocation12 [shape = 's32[1]{0}', space=sflag, size = 0x4, scoped, tag = 'scoped memory for it_base_net_apply.1']
    #allocation13 [shape = 'u8[32768]{0}', space=vmem, size = 0x8000, scoped, tag = 'input window, operand 11, single buffered']
    #allocation14 [shape = 'u8[1024]{0}', space=vmem, size = 0x400, scoped, tag = 'input window, operand 13, single buffered']
    #allocation15 [shape = 's32[1]{0}', space=sflag, size = 0x4, scoped, tag = 'scoped memory for it_base_net_apply.1']
    #allocation16 [shape = 'u8[4096]{0}', space=vmem, size = 0x1000, scoped, tag = 'output window, operand 0, single buffered']
    %21 = vsyncpa [#allocation3], 0
    %22 = vsyncpa [#allocation6], 0
    %23 = vsyncpa [#allocation9], 0
    %24 = vsyncpa [#allocation12], 0
    %25 = vsyncpa [#allocation15], 0
    %26 = vsyncpa [#allocation4], 0
    // Predicated region
    $region2: #{it_base_net_apply.1} parent=1 // pred_check
      _
    $region3: #{it_base_net_apply.1} parent=1 // pred_check_branch
      %28 = sbr.rel (0) target = $region5
    $region4: #{it_base_net_apply.1} parent=1 // pred_region
      _
    $region5: #{it_base_net_apply.1} parent=1 // pred_fallthru
      _
    // Predicated region
    $region6: #{it_base_net_apply.1} parent=1 // pred_check
      _
    $region7: #{it_base_net_apply.1} parent=1 // pred_check_branch
      %30 = sbr.rel (0) target = $region9
    $region8: #{it_base_net_apply.1} parent=1 // pred_region
      _
    $region9: #{it_base_net_apply.1} parent=1 // pred_fallthru
      _
    // Predicated region
    $region10: #{it_base_net_apply.1} parent=1 // pred_check
      _
    $region11: #{it_base_net_apply.1} parent=1 // pred_check_branch
      %32 = sbr.rel (0) target = $region13
    $region12: #{it_base_net_apply.1} parent=1 // pred_region
      _
    $region13: #{it_base_net_apply.1} parent=1 // pred_fallthru
      _
    // Predicated region
    $region14: #{it_base_net_apply.1} parent=1 // pred_check
      _
    $region15: #{it_base_net_apply.1} parent=1 // pred_check_branch
      %34 = sbr.rel (0) target = $region17
    $region16: #{it_base_net_apply.1} parent=1 // pred_region
      _
    $region17: #{it_base_net_apply.1} parent=1 // pred_fallthru
      _
    // Predicated region
    $region18: #{it_base_net_apply.1} parent=1 // pred_check
      _
    $region19: #{it_base_net_apply.1} parent=1 // pred_check_branch
      %36 = sbr.rel (0) target = $region21
    $region20: #{it_base_net_apply.1} parent=1 // pred_region
      %s38 = ssub.s32 16, 16
      %39 = vsyncadd [#allocation3], %s38
      %s41 = sshll.u32 [#allocation2], 4
      %s42 = int_to_ptr.vmem [resolvable:$true] %s41
      %44 = dma.hbm_to_vmem [thread:$0]  %s4, 16, %s42, [#allocation3]
    $region21: #{it_base_net_apply.1} parent=1 // pred_fallthru
      _
    // Predicated region
    $region22: #{it_base_net_apply.1} parent=1 // pred_check
      _
    $region23: #{it_base_net_apply.1} parent=1 // pred_check_branch
      %46 = sbr.rel (0) target = $region25
    $region24: #{it_base_net_apply.1} parent=1 // pred_region
      %s48 = ssub.s32 512, 512
      %49 = vsyncadd [#allocation6], %s48
      %s50 = sshll.u32 [#allocation5], 4
      %s51 = int_to_ptr.vmem [resolvable:$true] %s50
      %56 = dma.hbm_to_vmem [thread:$0]  %s5, 512, %s51, [#allocation6], 128, 128, 8
    $region25: #{it_base_net_apply.1} parent=1 // pred_fallthru
      _
    // Predicated region
    $region26: #{it_base_net_apply.1} parent=1 // pred_check
      _
    $region27: #{it_base_net_apply.1} parent=1 // pred_check_branch
      %58 = sbr.rel (0) target = $region29
    $region28: #{it_base_net_apply.1} parent=1 // pred_region
      %s60 = ssub.s32 32, 32
      %61 = vsyncadd [#allocation6], %s60
      %s63 = sshll.u32 [#allocation7], 4
      %s64 = int_to_ptr.vmem [resolvable:$true] %s63
      %66 = dma.hbm_to_vmem [thread:$0]  %s6, 32, %s64, [#allocation6]
    $region29: #{it_base_net_apply.1} parent=1 // pred_fallthru
      _
    // Predicated region
    $region30: #{it_base_net_apply.1} parent=1 // pred_check
      _
    $region31: #{it_base_net_apply.1} parent=1 // pred_check_branch
      %68 = sbr.rel (0) target = $region33
    $region32: #{it_base_net_apply.1} parent=1 // pred_region
      %s70 = ssub.s32 1024, 1024
      %71 = vsyncadd [#allocation9], %s70
      %s72 = sshll.u32 [#allocation8], 4
      %s73 = int_to_ptr.vmem [resolvable:$true] %s72
      %78 = dma.hbm_to_vmem [thread:$0]  %s7, 1024, %s73, [#allocation9], 128, 128, 8
    $region33: #{it_base_net_apply.1} parent=1 // pred_fallthru
      _
    // Predicated region
    $region34: #{it_base_net_apply.1} parent=1 // pred_check
      _
    $region35: #{it_base_net_apply.1} parent=1 // pred_check_branch
      %80 = sbr.rel (0) target = $region37
    $region36: #{it_base_net_apply.1} parent=1 // pred_region
      _
    $region37: #{it_base_net_apply.1} parent=1 // pred_fallthru
      _
    // Predicated region
    $region38: #{it_base_net_apply.1} parent=1 // pred_check
      _
    $region39: #{it_base_net_apply.1} parent=1 // pred_check_branch
      %82 = sbr.rel (0) target = $region41
    $region40: #{it_base_net_apply.1} parent=1 // pred_region
      %s84 = ssub.s32 1024, 1024
      %85 = vsyncadd [#allocation9], %s84
      %s86 = sshll.u32 [#allocation10], 4
      %s87 = int_to_ptr.vmem [resolvable:$true] %s86
      %92 = dma.hbm_to_vmem [thread:$0]  %s9, 1024, %s87, [#allocation9], 128, 128, 8
    $region41: #{it_base_net_apply.1} parent=1 // pred_fallthru
      _
    // Predicated region
    $region42: #{it_base_net_apply.1} parent=1 // pred_check
      _
    $region43: #{it_base_net_apply.1} parent=1 // pred_check_branch
      %94 = sbr.rel (0) target = $region45
    $region44: #{it_base_net_apply.1} parent=1 // pred_region
      %s96 = ssub.s32 32, 32
      %97 = vsyncadd [#allocation12], %s96
      %s99 = sshll.u32 [#allocation11], 4
      %s100 = int_to_ptr.vmem [resolvable:$true] %s99
      %102 = dma.hbm_to_vmem [thread:$0]  %s10, 32, %s100, [#allocation12]
    $region45: #{it_base_net_apply.1} parent=1 // pred_fallthru
      _
    // Predicated region
    $region46: #{it_base_net_apply.1} parent=1 // pred_check
      _
    $region47: #{it_base_net_apply.1} parent=1 // pred_check_branch
      %104 = sbr.rel (0) target = $region49
    $region48: #{it_base_net_apply.1} parent=1 // pred_region
      %s106 = ssub.s32 1024, 1024
      %107 = vsyncadd [#allocation12], %s106
      %s108 = sshll.u32 [#allocation13], 4
      %s109 = int_to_ptr.vmem [resolvable:$true] %s108
      %114 = dma.hbm_to_vmem [thread:$0]  %s11, 1024, %s109, [#allocation12], 128, 128, 8
    $region49: #{it_base_net_apply.1} parent=1 // pred_fallthru
      _
    // Predicated region
    $region50: #{it_base_net_apply.1} parent=1 // pred_check
      _
    $region51: #{it_base_net_apply.1} parent=1 // pred_check_branch
      %116 = sbr.rel (0) target = $region53
    $region52: #{it_base_net_apply.1} parent=1 // pred_region
      _
    $region53: #{it_base_net_apply.1} parent=1 // pred_fallthru
      _
    // Predicated region
    $region54: #{it_base_net_apply.1} parent=1 // pred_check
      _
    $region55: #{it_base_net_apply.1} parent=1 // pred_check_branch
      %118 = sbr.rel (0) target = $region57
    $region56: #{it_base_net_apply.1} parent=1 // pred_region
      %s120 = ssub.s32 32, 32
      %121 = vsyncadd [#allocation15], %s120
      %s123 = sshll.u32 [#allocation14], 4
      %s124 = int_to_ptr.vmem [resolvable:$true] %s123
      %126 = dma.hbm_to_vmem [thread:$0]  %s13, 32, %s124, [#allocation15]
    $region57: #{it_base_net_apply.1} parent=1 // pred_fallthru
      _
    // Predicated region
    $region58: #{it_base_net_apply.1} parent=1 // pred_check
      _
    $region59: #{it_base_net_apply.1} parent=1 // pred_check_branch
      %128 = sbr.rel (0) target = $region61
    $region60: #{it_base_net_apply.1} parent=1 // pred_region
      %129 = dma.done [#allocation3], 16
    $region61: #{it_base_net_apply.1} parent=1 // pred_fallthru
      _
    // Predicated region
    $region62: #{it_base_net_apply.1} parent=1 // pred_check
      _
    $region63: #{it_base_net_apply.1} parent=1 // pred_check_branch
      %131 = sbr.rel (0) target = $region65
    $region64: #{it_base_net_apply.1} parent=1 // pred_region
      %132 = dma.done [#allocation6], 512
    $region65: #{it_base_net_apply.1} parent=1 // pred_fallthru
      _
    // Predicated region
    $region66: #{it_base_net_apply.1} parent=1 // pred_check
      _
    $region67: #{it_base_net_apply.1} parent=1 // pred_check_branch
      %134 = sbr.rel (0) target = $region69
    $region68: #{it_base_net_apply.1} parent=1 // pred_region
      %135 = dma.done [#allocation6], 32
    $region69: #{it_base_net_apply.1} parent=1 // pred_fallthru
      _
    // Predicated region
    $region70: #{it_base_net_apply.1} parent=1 // pred_check
      _
    $region71: #{it_base_net_apply.1} parent=1 // pred_check_branch
      %137 = sbr.rel (0) target = $region73
    $region72: #{it_base_net_apply.1} parent=1 // pred_region
      %138 = dma.done [#allocation9], 1024
    $region73: #{it_base_net_apply.1} parent=1 // pred_fallthru
      _
    // Predicated region
    $region74: #{it_base_net_apply.1} parent=1 // pred_check
      _
    $region75: #{it_base_net_apply.1} parent=1 // pred_check_branch
      %140 = sbr.rel (0) target = $region77
    $region76: #{it_base_net_apply.1} parent=1 // pred_region
      %141 = dma.done [#allocation9], 1024
    $region77: #{it_base_net_apply.1} parent=1 // pred_fallthru
      _
    // Predicated region
    $region78: #{it_base_net_apply.1} parent=1 // pred_check
      _
    $region79: #{it_base_net_apply.1} parent=1 // pred_check_branch
      %143 = sbr.rel (0) target = $region81
    $region80: #{it_base_net_apply.1} parent=1 // pred_region
      %144 = dma.done [#allocation12], 32
    $region81: #{it_base_net_apply.1} parent=1 // pred_fallthru
      _
    // Predicated region
    $region82: #{it_base_net_apply.1} parent=1 // pred_check
      _
    $region83: #{it_base_net_apply.1} parent=1 // pred_check_branch
      %146 = sbr.rel (0) target = $region85
    $region84: #{it_base_net_apply.1} parent=1 // pred_region
      %147 = dma.done [#allocation12], 1024
    $region85: #{it_base_net_apply.1} parent=1 // pred_fallthru
      _
    // Predicated region
    $region86: #{it_base_net_apply.1} parent=1 // pred_check
      _
    $region87: #{it_base_net_apply.1} parent=1 // pred_check_branch
      %149 = sbr.rel (0) target = $region89
    $region88: #{it_base_net_apply.1} parent=1 // pred_region
      %150 = dma.done [#allocation15], 32
    $region89: #{it_base_net_apply.1} parent=1 // pred_fallthru
      _
    %v152 = vld [vmem:[%s1] sm:$0xff]
    %v153 = vld [vmem:[%s2] sm:$0xff]
    %v154 = vsub.f32 1.0, %v153
    %v155 = vmul.f32 %v154, %v152
    %v156 = vld [vmem:[%s0] sm:$0xff]
    %v157 = vld [vmem:[%s0 + $0x8] sm:$0xff]
    %v158 = vld [vmem:[%s0 + $0x10] sm:$0xff]
    %v159 = vld [vmem:[%s0 + $0x18] sm:$0xff]
    %v160 = vld [vmem:[%s0 + $0x20] sm:$0xff]
    %v161 = vld [vmem:[%s0 + $0x28] sm:$0xff]
    %v162 = vld [vmem:[%s0 + $0x30] sm:$0xff]
    %v163 = vld [vmem:[%s0 + $0x38] sm:$0xff]
    %v164 = vld [vmem:[%s3] sm:$0x3]
    %166 = vset.pattern.permute.xlu0 0
    %167 = vperm.xlu0 %166, %v156
    %v168 = vpop.permute.xlu0 %167
    %171 = vset.pattern.permute.xlu0 0
    %172 = vperm.xlu0 %171, %v157
    %v173 = vpop.permute.xlu0 %172
    %176 = vset.pattern.permute.xlu0 0
    %177 = vperm.xlu0 %176, %v158
    %v178 = vpop.permute.xlu0 %177
    %181 = vset.pattern.permute.xlu0 0
    %182 = vperm.xlu0 %181, %v159
    %v183 = vpop.permute.xlu0 %182
    %186 = vset.pattern.permute.xlu0 0
    %187 = vperm.xlu0 %186, %v160
    %v188 = vpop.permute.xlu0 %187
    %191 = vset.pattern.permute.xlu0 0
    %192 = vperm.xlu0 %191, %v161
    %v193 = vpop.permute.xlu0 %192
    %196 = vset.pattern.permute.xlu0 0
    %197 = vperm.xlu0 %196, %v162
    %v198 = vpop.permute.xlu0 %197
    %201 = vset.pattern.permute.xlu0 0
    %202 = vperm.xlu0 %201, %v163
    %v203 = vpop.permute.xlu0 %202
    %v205 = vlaneseq
    %v206 = vshrl.u32 %v205, 7
    %v207 = vsub.s32 0, %v206
    %v208 = vrot.slane %v164, %v207
    %v209 = vmul.f32 %v168, %v208
    %v210 = vmul.f32 %v173, %v208
    %v211 = vmul.f32 %v178, %v208
    %v212 = vmul.f32 %v183, %v208
    %v213 = vmul.f32 %v188, %v208
    %v214 = vmul.f32 %v193, %v208
    %v215 = vmul.f32 %v198, %v208
    %v216 = vmul.f32 %v203, %v208
    %217 = vset.pattern.permute.xlu0 1
    %218 = vperm.xlu0 %217, %v156
    %v219 = vpop.permute.xlu0 %218
    %221 = vset.pattern.permute.xlu0 1
    %222 = vperm.xlu0 %221, %v157
    %v223 = vpop.permute.xlu0 %222
    %225 = vset.pattern.permute.xlu0 1
    %226 = vperm.xlu0 %225, %v158
    %v227 = vpop.permute.xlu0 %226
    %229 = vset.pattern.permute.xlu0 1
    %230 = vperm.xlu0 %229, %v159
    %v231 = vpop.permute.xlu0 %230
    %233 = vset.pattern.permute.xlu0 1
    %234 = vperm.xlu0 %233, %v160
    %v235 = vpop.permute.xlu0 %234
    %237 = vset.pattern.permute.xlu0 1
    %238 = vperm.xlu0 %237, %v161
    %v239 = vpop.permute.xlu0 %238
    %241 = vset.pattern.permute.xlu0 1
    %242 = vperm.xlu0 %241, %v162
    %v243 = vpop.permute.xlu0 %242
    %245 = vset.pattern.permute.xlu0 1
    %246 = vperm.xlu0 %245, %v163
    %v247 = vpop.permute.xlu0 %246
    %v249 = vlaneseq
    %v250 = vshrl.u32 %v249, 7
    %v251 = vsub.s32 1, %v250
    %v252 = vrot.slane %v164, %v251
    %v253 = vmul.f32 %v219, %v252
    %v254 = vmul.f32 %v223, %v252
    %v255 = vmul.f32 %v227, %v252
    %v256 = vmul.f32 %v231, %v252
    %v257 = vmul.f32 %v235, %v252
    %v258 = vmul.f32 %v239, %v252
    %v259 = vmul.f32 %v243, %v252
    %v260 = vmul.f32 %v247, %v252
    %v261 = vadd.f32 %v209, %v253
    %v262 = vadd.f32 %v210, %v254
    %v263 = vadd.f32 %v211, %v255
    %v264 = vadd.f32 %v212, %v256
    %v265 = vadd.f32 %v213, %v257
    %v266 = vadd.f32 %v214, %v258
    %v267 = vadd.f32 %v215, %v259
    %v268 = vadd.f32 %v216, %v260
    %v269 = vld [vmem:[#allocation2] sm:$0x1]
    %v271 = vlaneseq
    %v272 = vshrl.u32 %v271, 7
    %v273 = vsub.s32 0, %v272
    %v274 = vrot.slane %v269, %v273
    %v276 = vadd.f32 %v261, %v274
    %v277 = vadd.f32 %v262, %v274
    %v278 = vadd.f32 %v263, %v274
    %v279 = vadd.f32 %v264, %v274
    %v280 = vadd.f32 %v265, %v274
    %v281 = vadd.f32 %v266, %v274
    %v282 = vadd.f32 %v267, %v274
    %v283 = vadd.f32 %v268, %v274
    %vm284 = vcmp.gt.f32.partialorder %v276, 0.0
    %vm285 = vcmp.gt.f32.partialorder %v277, 0.0
    %vm286 = vcmp.gt.f32.partialorder %v278, 0.0
    %vm287 = vcmp.gt.f32.partialorder %v279, 0.0
    %vm288 = vcmp.gt.f32.partialorder %v280, 0.0
    %vm289 = vcmp.gt.f32.partialorder %v281, 0.0
    %vm290 = vcmp.gt.f32.partialorder %v282, 0.0
    %vm291 = vcmp.gt.f32.partialorder %v283, 0.0
    %v292 = vmul.f32 %v276, 0.1
    %v293 = vmul.f32 %v277, 0.1
    %v294 = vmul.f32 %v278, 0.1
    %v295 = vmul.f32 %v279, 0.1
    %v296 = vmul.f32 %v280, 0.1
    %v297 = vmul.f32 %v281, 0.1
    %v298 = vmul.f32 %v282, 0.1
    %v299 = vmul.f32 %v283, 0.1
    %v300 = vsel %vm284, %v276, %v292
    %v301 = vsel %vm285, %v277, %v293
    %v302 = vsel %vm286, %v278, %v294
    %v303 = vsel %vm287, %v279, %v295
    %v304 = vsel %vm288, %v280, %v296
    %v305 = vsel %vm289, %v281, %v297
    %v306 = vsel %vm290, %v282, %v298
    %v307 = vsel %vm291, %v283, %v299
    %v308 = vpack.c.bf16 %v301, %v300
    %v309 = vpack.c.bf16 %v303, %v302
    %v310 = vpack.c.bf16 %v305, %v304
    %v311 = vpack.c.bf16 %v307, %v306
    %v312 = vld [vmem:[#allocation5] sm:$0xff]
    %v313 = vld [vmem:[#allocation5 + $0x8] sm:$0xff]
    %v314 = vld [vmem:[#allocation5 + $0x10] sm:$0xff]
    %v315 = vld [vmem:[#allocation5 + $0x18] sm:$0xff]
    %v316 = vld [vmem:[#allocation7] sm:$0x3]
    %v318 = vlaneseq
    %v319 = vshrl.u32 %v318, 7
    %v320 = vsub.s32 0, %v319
    %v321 = vrot.slane %v316, %v320
    %v322 = vlaneseq
    %v323 = vshrl.u32 %v322, 7
    %v324 = vsub.s32 1, %v323
    %v325 = vrot.slane %v316, %v324
    %v332 = vunpack.c.l.b16 %v312
    %v333 = vunpack.c.h.b16 %v312
    %v334 = vunpack.c.l.b16 %v313
    %v335 = vunpack.c.h.b16 %v313
    %v336 = vunpack.c.l.b16 %v314
    %v337 = vunpack.c.h.b16 %v314
    %v338 = vunpack.c.l.b16 %v315
    %v339 = vunpack.c.h.b16 %v315
    %v340 = vpack.c.b16 %v334, %v332
    %v341 = vpack.c.b16 %v335, %v333
    %v342 = vpack.c.b16 %v338, %v336
    %v343 = vpack.c.b16 %v339, %v337
    %vm348 = vcmask 261120
    %v350 = vsel %vm348, %v308, 0
    %v353 = vsel %vm348, %v309, 0
    %v356 = vsel %vm348, %v310, 0
    %v359 = vsel %vm348, %v311, 0
    %361 = vmatprep.subr.bf16.mxu0 %v341
    %362 = vmatpush1.bf16.msra.mxu0 %v340
    %363 = vmatprep.subr.bf16.mxu0 %v343
    %364 = vmatpush1.bf16.msra.mxu0 %v342
    %365 = vmatprep.subr.bf16.mxu0 0
    %366 = vmatpush1.bf16.msra.mxu0 0
    %367 = vmatprep.subr.bf16.mxu0 0
    %368 = vmatpush1.bf16.msra.mxu0 0
    %369 = vmatprep.subr.bf16.mxu0 0
    %370 = vmatpush1.bf16.msra.mxu0 0
    %371 = vmatprep.subr.bf16.mxu0 0
    %372 = vmatpush1.bf16.msra.mxu0 0
    %373 = vmatprep.subr.bf16.mxu0 0
    %374 = vmatpush1.bf16.msra.mxu0 0
    %375 = vmatprep.subr.bf16.mxu0 0
    %376 = vmatpush1.bf16.msra.mxu0 0
    %377 = vmatprep.subr.bf16.mxu0 0
    %378 = vmatpush1.bf16.msra.mxu0 0
    %379 = vmatprep.subr.bf16.mxu0 0
    %380 = vmatpush1.bf16.msra.mxu0 0
    %381 = vmatprep.subr.bf16.mxu0 0
    %382 = vmatpush1.bf16.msra.mxu0 0
    %383 = vmatprep.subr.bf16.mxu0 0
    %384 = vmatpush1.bf16.msra.mxu0 0
    %385 = vmatprep.subr.bf16.mxu0 0
    %386 = vmatpush1.bf16.msra.mxu0 0
    %387 = vmatprep.subr.bf16.mxu0 0
    %388 = vmatpush1.bf16.msra.mxu0 0
    %389 = vmatprep.subr.bf16.mxu0 0
    %390 = vmatpush1.bf16.msra.mxu0 0
    %391 = vmatprep.subr.bf16.mxu0 0
    %392 = vmatpush1.bf16.msra.mxu0 0
    %393 = vmatprep.mubr.bf16.mxu0 0
    %394 = vmatmul.mubr.bf16.gmra.mrb[0].mxu0 %v350
    %v395 = vpop.f32.mrb[0].mxu0
    %v396 = vadd.f32 %v321, %v395
    %v397 = vpop.f32.mrb[0].mxu0
    %v398 = vadd.f32 %v325, %v397
    %v399 = vpop.f32.mrb[0].mxu0
    %v400 = vadd.f32 %v321, %v399
    %v401 = vpop.f32.mrb[0].mxu0
    %v402 = vadd.f32 %v325, %v401
    %403 = vmatprep.mubr.bf16.mxu0 0
    %404 = vmatmul.mubr.bf16.gmra.mrb[0].mxu0 %v353
    %v405 = vpop.f32.mrb[0].mxu0
    %v406 = vadd.f32 %v321, %v405
    %v407 = vpop.f32.mrb[0].mxu0
    %v408 = vadd.f32 %v325, %v407
    %v409 = vpop.f32.mrb[0].mxu0
    %v410 = vadd.f32 %v321, %v409
    %v411 = vpop.f32.mrb[0].mxu0
    %v412 = vadd.f32 %v325, %v411
    %413 = vmatprep.mubr.bf16.mxu0 0
    %414 = vmatmul.mubr.bf16.gmra.mrb[0].mxu0 %v356
    %v415 = vpop.f32.mrb[0].mxu0
    %v416 = vadd.f32 %v321, %v415
    %v417 = vpop.f32.mrb[0].mxu0
    %v418 = vadd.f32 %v325, %v417
    %v419 = vpop.f32.mrb[0].mxu0
    %v420 = vadd.f32 %v321, %v419
    %v421 = vpop.f32.mrb[0].mxu0
    %v422 = vadd.f32 %v325, %v421
    %423 = vmatprep.mubr.bf16.mxu0 0
    %424 = vmatmul.mubr.bf16.gmra.mrb[0].mxu0 %v359
    %v425 = vpop.f32.mrb[0].mxu0
    %v426 = vadd.f32 %v321, %v425
    %v427 = vpop.f32.mrb[0].mxu0
    %v428 = vadd.f32 %v325, %v427
    %v429 = vpop.f32.mrb[0].mxu0
    %v430 = vadd.f32 %v321, %v429
    %v431 = vpop.f32.mrb[0].mxu0
    %v432 = vadd.f32 %v325, %v431
    %433 = vdwg.mxu0
    %v434 = vld [vmem:[#allocation8] sm:$0xff]
    %v435 = vld [vmem:[#allocation8 + $0x8] sm:$0xff]
    %v436 = vld [vmem:[#allocation8 + $0x10] sm:$0xff]
    %v437 = vld [vmem:[#allocation8 + $0x18] sm:$0xff]
    %v438 = vld [vmem:[#allocation8 + $0x20] sm:$0xff]
    %v439 = vld [vmem:[#allocation8 + $0x28] sm:$0xff]
    %v440 = vld [vmem:[#allocation8 + $0x30] sm:$0xff]
    %v441 = vld [vmem:[#allocation8 + $0x38] sm:$0xff]
    %v442 = vld [vmem:[%s8] sm:$0x1]
    %v451 = vunpack.c.l.b16 %v434
    %v452 = vunpack.c.h.b16 %v434
    %v453 = vunpack.c.l.b16 %v435
    %v454 = vunpack.c.h.b16 %v435
    %v455 = vunpack.c.l.b16 %v436
    %v456 = vunpack.c.h.b16 %v436
    %v457 = vunpack.c.l.b16 %v437
    %v458 = vunpack.c.h.b16 %v437
    %v459 = vunpack.c.l.b16 %v438
    %v460 = vunpack.c.h.b16 %v438
    %v461 = vunpack.c.l.b16 %v439
    %v462 = vunpack.c.h.b16 %v439
    %v463 = vunpack.c.l.b16 %v440
    %v464 = vunpack.c.h.b16 %v440
    %v465 = vunpack.c.l.b16 %v441
    %v466 = vunpack.c.h.b16 %v441
    %v467 = vpack.c.b16 %v453, %v451
    %v468 = vpack.c.b16 %v454, %v452
    %v469 = vpack.c.b16 %v457, %v455
    %v470 = vpack.c.b16 %v458, %v456
    %v471 = vpack.c.b16 %v461, %v459
    %v472 = vpack.c.b16 %v462, %v460
    %v473 = vpack.c.b16 %v465, %v463
    %v474 = vpack.c.b16 %v466, %v464
    %vm483 = vcmask 523264
    %v485 = vsel %vm483, 0, 0
    %487 = vmatprep.subr.bf16.mxu0 %v468
    %488 = vmatpush1.bf16.msra.mxu0 %v467
    %489 = vmatprep.subr.bf16.mxu0 %v470
    %490 = vmatpush1.bf16.msra.mxu0 %v469
    %491 = vmatprep.subr.bf16.mxu0 %v472
    %492 = vmatpush1.bf16.msra.mxu0 %v471
    %493 = vmatprep.subr.bf16.mxu0 %v474
    %494 = vmatpush1.bf16.msra.mxu0 %v473
    %495 = vmatprep.subr.bf16.mxu0 0
    %496 = vmatpush1.bf16.msra.mxu0 0
    %497 = vmatprep.subr.bf16.mxu0 0
    %498 = vmatpush1.bf16.msra.mxu0 0
    %499 = vmatprep.subr.bf16.mxu0 0
    %500 = vmatpush1.bf16.msra.mxu0 0
    %501 = vmatprep.subr.bf16.mxu0 0
    %502 = vmatpush1.bf16.msra.mxu0 0
    %503 = vmatprep.subr.bf16.mxu0 0
    %504 = vmatpush1.bf16.msra.mxu0 0
    %505 = vmatprep.subr.bf16.mxu0 0
    %506 = vmatpush1.bf16.msra.mxu0 0
    %507 = vmatprep.subr.bf16.mxu0 0
    %508 = vmatpush1.bf16.msra.mxu0 0
    %509 = vmatprep.subr.bf16.mxu0 0
    %510 = vmatpush1.bf16.msra.mxu0 0
    %511 = vmatprep.subr.bf16.mxu0 0
    %512 = vmatpush1.bf16.msra.mxu0 0
    %513 = vmatprep.subr.bf16.mxu0 0
    %514 = vmatpush1.bf16.msra.mxu0 0
    %515 = vmatprep.subr.bf16.mxu0 0
    %516 = vmatpush1.bf16.msra.mxu0 0
    %517 = vmatprep.subr.bf16.mxu0 0
    %518 = vmatpush1.bf16.msra.mxu0 0
    %519 = vmatprep.mubr.bf16.mxu0 0
    %520 = vmatmul.mubr.bf16.gmra.mrb[0].mxu0 %v485
    %v521 = vpop.f32.mrb[0].mxu0
    %v522 = vadd.f32 0.0, %v521
    %v523 = vpop.f32.mrb[0].mxu0
    %v524 = vadd.f32 0.0, %v523
    %v525 = vpop.f32.mrb[0].mxu0
    %v526 = vpop.f32.mrb[0].mxu0
    %527 = vdwg.mxu0
    %v528 = vadd.f32 %v396, %v522
    %v529 = vxor.u32 %v528, 2147483648
    %v530 = vmul.f32 %v529, 1.442695
    %v531 = vpow.pop %v530
    %v532 = vadd.f32 %v531, 1.0
    %v533 = vrcp.pop %v532
    %v534 = vmul.f32 1.0, %v533
    %v536 = vlaneseq
    %v537 = vshrl.u32 %v536, 7
    %v538 = vsub.s32 0, %v537
    %v539 = vrot.slane %v442, %v538
    %v541 = vadd.f32 %v524, %v539
    %v542 = vmul.f32 %v534, %v541
    %v543 = vadd.f32 %v398, %v542
    %v544 = vtanh.pop %v543
    %v545 = vsub.f32 1.0, %v534
    %547 = vrot.lane.b32.xlu0 %v544, 64
    %v548 = vpop.permute.xlu0 %547
    %v550 = vmul.f32 %v545, %v548
    %v551 = vmul.f32 %v534, 0.0
    %v552 = vadd.f32 %v550, %v551
    %v553 = vpack.c.bf16 %v552, %v552
    %555 = vrot.lane.b32.xlu0 %v553, 64
    %v556 = vpop.permute.xlu0 %555
    %v558 = vsel %vm483, %v556, 0
    %560 = vmatprep.subr.bf16.mxu0 %v468
    %561 = vmatpush1.bf16.msra.mxu0 %v467
    %562 = vmatprep.subr.bf16.mxu0 %v470
    %563 = vmatpush1.bf16.msra.mxu0 %v469
    %564 = vmatprep.subr.bf16.mxu0 %v472
    %565 = vmatpush1.bf16.msra.mxu0 %v471
    %566 = vmatprep.subr.bf16.mxu0 %v474
    %567 = vmatpush1.bf16.msra.mxu0 %v473
    %568 = vmatprep.subr.bf16.mxu0 0
    %569 = vmatpush1.bf16.msra.mxu0 0
    %570 = vmatprep.subr.bf16.mxu0 0
    %571 = vmatpush1.bf16.msra.mxu0 0
    %572 = vmatprep.subr.bf16.mxu0 0
    %573 = vmatpush1.bf16.msra.mxu0 0
    %574 = vmatprep.subr.bf16.mxu0 0
    %575 = vmatpush1.bf16.msra.mxu0 0
    %576 = vmatprep.subr.bf16.mxu0 0
    %577 = vmatpush1.bf16.msra.mxu0 0
    %578 = vmatprep.subr.bf16.mxu0 0
    %579 = vmatpush1.bf16.msra.mxu0 0
    %580 = vmatprep.subr.bf16.mxu0 0
    %581 = vmatpush1.bf16.msra.mxu0 0
    %582 = vmatprep.subr.bf16.mxu0 0
    %583 = vmatpush1.bf16.msra.mxu0 0
    %584 = vmatprep.subr.bf16.mxu0 0
    %585 = vmatpush1.bf16.msra.mxu0 0
    %586 = vmatprep.subr.bf16.mxu0 0
    %587 = vmatpush1.bf16.msra.mxu0 0
    %588 = vmatprep.subr.bf16.mxu0 0
    %589 = vmatpush1.bf16.msra.mxu0 0
    %590 = vmatprep.subr.bf16.mxu0 0
    %591 = vmatpush1.bf16.msra.mxu0 0
    %592 = vmatprep.mubr.bf16.mxu0 0
    %593 = vmatmul.mubr.bf16.gmra.mrb[0].mxu0 %v558
    %v594 = vpop.f32.mrb[0].mxu0
    %v595 = vadd.f32 0.0, %v594
    %v596 = vpop.f32.mrb[0].mxu0
    %v597 = vadd.f32 0.0, %v596
    %v598 = vpop.f32.mrb[0].mxu0
    %v599 = vpop.f32.mrb[0].mxu0
    %600 = vdwg.mxu0
    %v601 = vadd.f32 %v400, %v595
    %v602 = vxor.u32 %v601, 2147483648
    %v603 = vmul.f32 %v602, 1.442695
    %v604 = vpow.pop %v603
    %v605 = vadd.f32 %v604, 1.0
    %v606 = vrcp.pop %v605
    %v607 = vmul.f32 1.0, %v606
    %v608 = vadd.f32 %v597, %v539
    %v609 = vmul.f32 %v607, %v608
    %v610 = vadd.f32 %v402, %v609
    %v611 = vtanh.pop %v610
    %v612 = vsub.f32 1.0, %v607
    %614 = vrot.lane.b32.xlu0 %v611, 64
    %v615 = vpop.permute.xlu0 %614
    %v617 = vmul.f32 %v612, %v615
    %v618 = vmul.f32 %v607, %v552
    %v619 = vadd.f32 %v617, %v618
    %v620 = vpack.c.bf16 %v619, %v619
    %622 = vrot.lane.b32.xlu0 %v620, 64
    %v623 = vpop.permute.xlu0 %622
    %v625 = vsel %vm483, %v623, 0
    %627 = vmatprep.subr.bf16.mxu0 %v468
    %628 = vmatpush1.bf16.msra.mxu0 %v467
    %629 = vmatprep.subr.bf16.mxu0 %v470
    %630 = vmatpush1.bf16.msra.mxu0 %v469
    %631 = vmatprep.subr.bf16.mxu0 %v472
    %632 = vmatpush1.bf16.msra.mxu0 %v471
    %633 = vmatprep.subr.bf16.mxu0 %v474
    %634 = vmatpush1.bf16.msra.mxu0 %v473
    %635 = vmatprep.subr.bf16.mxu0 0
    %636 = vmatpush1.bf16.msra.mxu0 0
    %637 = vmatprep.subr.bf16.mxu0 0
    %638 = vmatpush1.bf16.msra.mxu0 0
    %639 = vmatprep.subr.bf16.mxu0 0
    %640 = vmatpush1.bf16.msra.mxu0 0
    %641 = vmatprep.subr.bf16.mxu0 0
    %642 = vmatpush1.bf16.msra.mxu0 0
    %643 = vmatprep.subr.bf16.mxu0 0
    %644 = vmatpush1.bf16.msra.mxu0 0
    %645 = vmatprep.subr.bf16.mxu0 0
    %646 = vmatpush1.bf16.msra.mxu0 0
    %647 = vmatprep.subr.bf16.mxu0 0
    %648 = vmatpush1.bf16.msra.mxu0 0
    %649 = vmatprep.subr.bf16.mxu0 0
    %650 = vmatpush1.bf16.msra.mxu0 0
    %651 = vmatprep.subr.bf16.mxu0 0
    %652 = vmatpush1.bf16.msra.mxu0 0
    %653 = vmatprep.subr.bf16.mxu0 0
    %654 = vmatpush1.bf16.msra.mxu0 0
    %655 = vmatprep.subr.bf16.mxu0 0
    %656 = vmatpush1.bf16.msra.mxu0 0
    %657 = vmatprep.subr.bf16.mxu0 0
    %658 = vmatpush1.bf16.msra.mxu0 0
    %659 = vmatprep.mubr.bf16.mxu0 0
    %660 = vmatmul.mubr.bf16.gmra.mrb[0].mxu0 %v625
    %v661 = vpop.f32.mrb[0].mxu0
    %v662 = vadd.f32 0.0, %v661
    %v663 = vpop.f32.mrb[0].mxu0
    %v664 = vadd.f32 0.0, %v663
    %v665 = vpop.f32.mrb[0].mxu0
    %v666 = vpop.f32.mrb[0].mxu0
    %667 = vdwg.mxu0
    %v668 = vadd.f32 %v406, %v662
    %v669 = vxor.u32 %v668, 2147483648
    %v670 = vmul.f32 %v669, 1.442695
    %v671 = vpow.pop %v670
    %v672 = vadd.f32 %v671, 1.0
    %v673 = vrcp.pop %v672
    %v674 = vmul.f32 1.0, %v673
    %v675 = vadd.f32 %v664, %v539
    %v676 = vmul.f32 %v674, %v675
    %v677 = vadd.f32 %v408, %v676
    %v678 = vtanh.pop %v677
    %v679 = vsub.f32 1.0, %v674
    %681 = vrot.lane.b32.xlu0 %v678, 64
    %v682 = vpop.permute.xlu0 %681
    %v684 = vmul.f32 %v679, %v682
    %v685 = vmul.f32 %v674, %v619
    %v686 = vadd.f32 %v684, %v685
    %v687 = vpack.c.bf16 %v686, %v686
    %689 = vrot.lane.b32.xlu0 %v687, 64
    %v690 = vpop.permute.xlu0 %689
    %v692 = vsel %vm483, %v690, 0
    %694 = vmatprep.subr.bf16.mxu0 %v468
    %695 = vmatpush1.bf16.msra.mxu0 %v467
    %696 = vmatprep.subr.bf16.mxu0 %v470
    %697 = vmatpush1.bf16.msra.mxu0 %v469
    %698 = vmatprep.subr.bf16.mxu0 %v472
    %699 = vmatpush1.bf16.msra.mxu0 %v471
    %700 = vmatprep.subr.bf16.mxu0 %v474
    %701 = vmatpush1.bf16.msra.mxu0 %v473
    %702 = vmatprep.subr.bf16.mxu0 0
    %703 = vmatpush1.bf16.msra.mxu0 0
    %704 = vmatprep.subr.bf16.mxu0 0
    %705 = vmatpush1.bf16.msra.mxu0 0
    %706 = vmatprep.subr.bf16.mxu0 0
    %707 = vmatpush1.bf16.msra.mxu0 0
    %708 = vmatprep.subr.bf16.mxu0 0
    %709 = vmatpush1.bf16.msra.mxu0 0
    %710 = vmatprep.subr.bf16.mxu0 0
    %711 = vmatpush1.bf16.msra.mxu0 0
    %712 = vmatprep.subr.bf16.mxu0 0
    %713 = vmatpush1.bf16.msra.mxu0 0
    %714 = vmatprep.subr.bf16.mxu0 0
    %715 = vmatpush1.bf16.msra.mxu0 0
    %716 = vmatprep.subr.bf16.mxu0 0
    %717 = vmatpush1.bf16.msra.mxu0 0
    %718 = vmatprep.subr.bf16.mxu0 0
    %719 = vmatpush1.bf16.msra.mxu0 0
    %720 = vmatprep.subr.bf16.mxu0 0
    %721 = vmatpush1.bf16.msra.mxu0 0
    %722 = vmatprep.subr.bf16.mxu0 0
    %723 = vmatpush1.bf16.msra.mxu0 0
    %724 = vmatprep.subr.bf16.mxu0 0
    %725 = vmatpush1.bf16.msra.mxu0 0
    %726 = vmatprep.mubr.bf16.mxu0 0
    %727 = vmatmul.mubr.bf16.gmra.mrb[0].mxu0 %v692
    %v728 = vpop.f32.mrb[0].mxu0
    %v729 = vadd.f32 0.0, %v728
    %v730 = vpop.f32.mrb[0].mxu0
    %v731 = vadd.f32 0.0, %v730
    %v732 = vpop.f32.mrb[0].mxu0
    %v733 = vpop.f32.mrb[0].mxu0
    %734 = vdwg.mxu0
    %v735 = vadd.f32 %v410, %v729
    %v736 = vxor.u32 %v735, 2147483648
    %v737 = vmul.f32 %v736, 1.442695
    %v738 = vpow.pop %v737
    %v739 = vadd.f32 %v738, 1.0
    %v740 = vrcp.pop %v739
    %v741 = vmul.f32 1.0, %v740
    %v742 = vadd.f32 %v731, %v539
    %v743 = vmul.f32 %v741, %v742
    %v744 = vadd.f32 %v412, %v743
    %v745 = vtanh.pop %v744
    %v746 = vsub.f32 1.0, %v741
    %748 = vrot.lane.b32.xlu0 %v745, 64
    %v749 = vpop.permute.xlu0 %748
    %v751 = vmul.f32 %v746, %v749
    %v752 = vmul.f32 %v741, %v686
    %v753 = vadd.f32 %v751, %v752
    %v754 = vpack.c.bf16 %v753, %v753
    %756 = vrot.lane.b32.xlu0 %v754, 64
    %v757 = vpop.permute.xlu0 %756
    %v759 = vsel %vm483, %v757, 0
    %761 = vmatprep.subr.bf16.mxu0 %v468
    %762 = vmatpush1.bf16.msra.mxu0 %v467
    %763 = vmatprep.subr.bf16.mxu0 %v470
    %764 = vmatpush1.bf16.msra.mxu0 %v469
    %765 = vmatprep.subr.bf16.mxu0 %v472
    %766 = vmatpush1.bf16.msra.mxu0 %v471
    %767 = vmatprep.subr.bf16.mxu0 %v474
    %768 = vmatpush1.bf16.msra.mxu0 %v473
    %769 = vmatprep.subr.bf16.mxu0 0
    %770 = vmatpush1.bf16.msra.mxu0 0
    %771 = vmatprep.subr.bf16.mxu0 0
    %772 = vmatpush1.bf16.msra.mxu0 0
    %773 = vmatprep.subr.bf16.mxu0 0
    %774 = vmatpush1.bf16.msra.mxu0 0
    %775 = vmatprep.subr.bf16.mxu0 0
    %776 = vmatpush1.bf16.msra.mxu0 0
    %777 = vmatprep.subr.bf16.mxu0 0
    %778 = vmatpush1.bf16.msra.mxu0 0
    %779 = vmatprep.subr.bf16.mxu0 0
    %780 = vmatpush1.bf16.msra.mxu0 0
    %781 = vmatprep.subr.bf16.mxu0 0
    %782 = vmatpush1.bf16.msra.mxu0 0
    %783 = vmatprep.subr.bf16.mxu0 0
    %784 = vmatpush1.bf16.msra.mxu0 0
    %785 = vmatprep.subr.bf16.mxu0 0
    %786 = vmatpush1.bf16.msra.mxu0 0
    %787 = vmatprep.subr.bf16.mxu0 0
    %788 = vmatpush1.bf16.msra.mxu0 0
    %789 = vmatprep.subr.bf16.mxu0 0
    %790 = vmatpush1.bf16.msra.mxu0 0
    %791 = vmatprep.subr.bf16.mxu0 0
    %792 = vmatpush1.bf16.msra.mxu0 0
    %793 = vmatprep.mubr.bf16.mxu0 0
    %794 = vmatmul.mubr.bf16.gmra.mrb[0].mxu0 %v759
    %v795 = vpop.f32.mrb[0].mxu0
    %v796 = vadd.f32 0.0, %v795
    %v797 = vpop.f32.mrb[0].mxu0
    %v798 = vadd.f32 0.0, %v797
    %v799 = vpop.f32.mrb[0].mxu0
    %v800 = vpop.f32.mrb[0].mxu0
    %801 = vdwg.mxu0
    %v802 = vadd.f32 %v416, %v796
    %v803 = vxor.u32 %v802, 2147483648
    %v804 = vmul.f32 %v803, 1.442695
    %v805 = vpow.pop %v804
    %v806 = vadd.f32 %v805, 1.0
    %v807 = vrcp.pop %v806
    %v808 = vmul.f32 1.0, %v807
    %v809 = vadd.f32 %v798, %v539
    %v810 = vmul.f32 %v808, %v809
    %v811 = vadd.f32 %v418, %v810
    %v812 = vtanh.pop %v811
    %v813 = vsub.f32 1.0, %v808
    %815 = vrot.lane.b32.xlu0 %v812, 64
    %v816 = vpop.permute.xlu0 %815
    %v818 = vmul.f32 %v813, %v816
    %v819 = vmul.f32 %v808, %v753
    %v820 = vadd.f32 %v818, %v819
    %v821 = vpack.c.bf16 %v820, %v820
    %823 = vrot.lane.b32.xlu0 %v821, 64
    %v824 = vpop.permute.xlu0 %823
    %v826 = vsel %vm483, %v824, 0
    %828 = vmatprep.subr.bf16.mxu0 %v468
    %829 = vmatpush1.bf16.msra.mxu0 %v467
    %830 = vmatprep.subr.bf16.mxu0 %v470
    %831 = vmatpush1.bf16.msra.mxu0 %v469
    %832 = vmatprep.subr.bf16.mxu0 %v472
    %833 = vmatpush1.bf16.msra.mxu0 %v471
    %834 = vmatprep.subr.bf16.mxu0 %v474
    %835 = vmatpush1.bf16.msra.mxu0 %v473
    %836 = vmatprep.subr.bf16.mxu0 0
    %837 = vmatpush1.bf16.msra.mxu0 0
    %838 = vmatprep.subr.bf16.mxu0 0
    %839 = vmatpush1.bf16.msra.mxu0 0
    %840 = vmatprep.subr.bf16.mxu0 0
    %841 = vmatpush1.bf16.msra.mxu0 0
    %842 = vmatprep.subr.bf16.mxu0 0
    %843 = vmatpush1.bf16.msra.mxu0 0
    %844 = vmatprep.subr.bf16.mxu0 0
    %845 = vmatpush1.bf16.msra.mxu0 0
    %846 = vmatprep.subr.bf16.mxu0 0
    %847 = vmatpush1.bf16.msra.mxu0 0
    %848 = vmatprep.subr.bf16.mxu0 0
    %849 = vmatpush1.bf16.msra.mxu0 0
    %850 = vmatprep.subr.bf16.mxu0 0
    %851 = vmatpush1.bf16.msra.mxu0 0
    %852 = vmatprep.subr.bf16.mxu0 0
    %853 = vmatpush1.bf16.msra.mxu0 0
    %854 = vmatprep.subr.bf16.mxu0 0
    %855 = vmatpush1.bf16.msra.mxu0 0
    %856 = vmatprep.subr.bf16.mxu0 0
    %857 = vmatpush1.bf16.msra.mxu0 0
    %858 = vmatprep.subr.bf16.mxu0 0
    %859 = vmatpush1.bf16.msra.mxu0 0
    %860 = vmatprep.mubr.bf16.mxu0 0
    %861 = vmatmul.mubr.bf16.gmra.mrb[0].mxu0 %v826
    %v862 = vpop.f32.mrb[0].mxu0
    %v863 = vadd.f32 0.0, %v862
    %v864 = vpop.f32.mrb[0].mxu0
    %v865 = vadd.f32 0.0, %v864
    %v866 = vpop.f32.mrb[0].mxu0
    %v867 = vpop.f32.mrb[0].mxu0
    %868 = vdwg.mxu0
    %v869 = vadd.f32 %v420, %v863
    %v870 = vxor.u32 %v869, 2147483648
    %v871 = vmul.f32 %v870, 1.442695
    %v872 = vpow.pop %v871
    %v873 = vadd.f32 %v872, 1.0
    %v874 = vrcp.pop %v873
    %v875 = vmul.f32 1.0, %v874
    %v876 = vadd.f32 %v865, %v539
    %v877 = vmul.f32 %v875, %v876
    %v878 = vadd.f32 %v422, %v877
    %v879 = vtanh.pop %v878
    %v880 = vsub.f32 1.0, %v875
    %882 = vrot.lane.b32.xlu0 %v879, 64
    %v883 = vpop.permute.xlu0 %882
    %v885 = vmul.f32 %v880, %v883
    %v886 = vmul.f32 %v875, %v820
    %v887 = vadd.f32 %v885, %v886
    %v888 = vpack.c.bf16 %v887, %v887
    %890 = vrot.lane.b32.xlu0 %v888, 64
    %v891 = vpop.permute.xlu0 %890
    %v893 = vsel %vm483, %v891, 0
    %895 = vmatprep.subr.bf16.mxu0 %v468
    %896 = vmatpush1.bf16.msra.mxu0 %v467
    %897 = vmatprep.subr.bf16.mxu0 %v470
    %898 = vmatpush1.bf16.msra.mxu0 %v469
    %899 = vmatprep.subr.bf16.mxu0 %v472
    %900 = vmatpush1.bf16.msra.mxu0 %v471
    %901 = vmatprep.subr.bf16.mxu0 %v474
    %902 = vmatpush1.bf16.msra.mxu0 %v473
    %903 = vmatprep.subr.bf16.mxu0 0
    %904 = vmatpush1.bf16.msra.mxu0 0
    %905 = vmatprep.subr.bf16.mxu0 0
    %906 = vmatpush1.bf16.msra.mxu0 0
    %907 = vmatprep.subr.bf16.mxu0 0
    %908 = vmatpush1.bf16.msra.mxu0 0
    %909 = vmatprep.subr.bf16.mxu0 0
    %910 = vmatpush1.bf16.msra.mxu0 0
    %911 = vmatprep.subr.bf16.mxu0 0
    %912 = vmatpush1.bf16.msra.mxu0 0
    %913 = vmatprep.subr.bf16.mxu0 0
    %914 = vmatpush1.bf16.msra.mxu0 0
    %915 = vmatprep.subr.bf16.mxu0 0
    %916 = vmatpush1.bf16.msra.mxu0 0
    %917 = vmatprep.subr.bf16.mxu0 0
    %918 = vmatpush1.bf16.msra.mxu0 0
    %919 = vmatprep.subr.bf16.mxu0 0
    %920 = vmatpush1.bf16.msra.mxu0 0
    %921 = vmatprep.subr.bf16.mxu0 0
    %922 = vmatpush1.bf16.msra.mxu0 0
    %923 = vmatprep.subr.bf16.mxu0 0
    %924 = vmatpush1.bf16.msra.mxu0 0
    %925 = vmatprep.subr.bf16.mxu0 0
    %926 = vmatpush1.bf16.msra.mxu0 0
    %927 = vmatprep.mubr.bf16.mxu0 0
    %928 = vmatmul.mubr.bf16.gmra.mrb[0].mxu0 %v893
    %v929 = vpop.f32.mrb[0].mxu0
    %v930 = vadd.f32 0.0, %v929
    %v931 = vpop.f32.mrb[0].mxu0
    %v932 = vadd.f32 0.0, %v931
    %v933 = vpop.f32.mrb[0].mxu0
    %v934 = vpop.f32.mrb[0].mxu0
    %935 = vdwg.mxu0
    %v936 = vadd.f32 %v426, %v930
    %v937 = vxor.u32 %v936, 2147483648
    %v938 = vmul.f32 %v937, 1.442695
    %v939 = vpow.pop %v938
    %v940 = vadd.f32 %v939, 1.0
    %v941 = vrcp.pop %v940
    %v942 = vmul.f32 1.0, %v941
    %v943 = vadd.f32 %v932, %v539
    %v944 = vmul.f32 %v942, %v943
    %v945 = vadd.f32 %v428, %v944
    %v946 = vtanh.pop %v945
    %v947 = vsub.f32 1.0, %v942
    %949 = vrot.lane.b32.xlu0 %v946, 64
    %v950 = vpop.permute.xlu0 %949
    %v952 = vmul.f32 %v947, %v950
    %v953 = vmul.f32 %v942, %v887
    %v954 = vadd.f32 %v952, %v953
    %v955 = vpack.c.bf16 %v954, %v954
    %957 = vrot.lane.b32.xlu0 %v955, 64
    %v958 = vpop.permute.xlu0 %957
    %v960 = vsel %vm483, %v958, 0
    %962 = vmatprep.subr.bf16.mxu0 %v468
    %963 = vmatpush1.bf16.msra.mxu0 %v467
    %964 = vmatprep.subr.bf16.mxu0 %v470
    %965 = vmatpush1.bf16.msra.mxu0 %v469
    %966 = vmatprep.subr.bf16.mxu0 %v472
    %967 = vmatpush1.bf16.msra.mxu0 %v471
    %968 = vmatprep.subr.bf16.mxu0 %v474
    %969 = vmatpush1.bf16.msra.mxu0 %v473
    %970 = vmatprep.subr.bf16.mxu0 0
    %971 = vmatpush1.bf16.msra.mxu0 0
    %972 = vmatprep.subr.bf16.mxu0 0
    %973 = vmatpush1.bf16.msra.mxu0 0
    %974 = vmatprep.subr.bf16.mxu0 0
    %975 = vmatpush1.bf16.msra.mxu0 0
    %976 = vmatprep.subr.bf16.mxu0 0
    %977 = vmatpush1.bf16.msra.mxu0 0
    %978 = vmatprep.subr.bf16.mxu0 0
    %979 = vmatpush1.bf16.msra.mxu0 0
    %980 = vmatprep.subr.bf16.mxu0 0
    %981 = vmatpush1.bf16.msra.mxu0 0
    %982 = vmatprep.subr.bf16.mxu0 0
    %983 = vmatpush1.bf16.msra.mxu0 0
    %984 = vmatprep.subr.bf16.mxu0 0
    %985 = vmatpush1.bf16.msra.mxu0 0
    %986 = vmatprep.subr.bf16.mxu0 0
    %987 = vmatpush1.bf16.msra.mxu0 0
    %988 = vmatprep.subr.bf16.mxu0 0
    %989 = vmatpush1.bf16.msra.mxu0 0
    %990 = vmatprep.subr.bf16.mxu0 0
    %991 = vmatpush1.bf16.msra.mxu0 0
    %992 = vmatprep.subr.bf16.mxu0 0
    %993 = vmatpush1.bf16.msra.mxu0 0
    %994 = vmatprep.mubr.bf16.mxu0 0
    %995 = vmatmul.mubr.bf16.gmra.mrb[0].mxu0 %v960
    %v996 = vpop.f32.mrb[0].mxu0
    %v997 = vadd.f32 0.0, %v996
    %v998 = vpop.f32.mrb[0].mxu0
    %v999 = vadd.f32 0.0, %v998
    %v1000 = vpop.f32.mrb[0].mxu0
    %v1001 = vpop.f32.mrb[0].mxu0
    %1002 = vdwg.mxu0
    %v1003 = vadd.f32 %v430, %v997
    %v1004 = vxor.u32 %v1003, 2147483648
    %v1005 = vmul.f32 %v1004, 1.442695
    %v1006 = vpow.pop %v1005
    %v1007 = vadd.f32 %v1006, 1.0
    %v1008 = vrcp.pop %v1007
    %v1009 = vmul.f32 1.0, %v1008
    %v1010 = vadd.f32 %v999, %v539
    %v1011 = vmul.f32 %v1009, %v1010
    %v1012 = vadd.f32 %v432, %v1011
    %v1013 = vtanh.pop %v1012
    %v1014 = vsub.f32 1.0, %v1009
    %1016 = vrot.lane.b32.xlu0 %v1013, 64
    %v1017 = vpop.permute.xlu0 %1016
    %v1019 = vmul.f32 %v1014, %v1017
    %v1020 = vmul.f32 %v1009, %v954
    %v1021 = vadd.f32 %v1019, %v1020
    %1023 = vset.pattern.permute.xlu0 0
    %1024 = vperm.xlu0 %1023, %v153
    %v1025 = vpop.permute.xlu0 %1024
    %v1027 = vmul.f32 %v1025, %v1021
    %1029 = vset.pattern.permute.xlu0 0
    %1030 = vperm.xlu0 %1029, %v155
    %v1031 = vpop.permute.xlu0 %1030
    %v1033 = vmul.f32 %v1031, %v1021
    %1035 = vrot.lane.b32.xlu0 %v1033, 32
    %v1036 = vpop.permute.xlu0 %1035
    %v1038 = vadd.f32 %v1027, %v1036
    %vm1039 = vcmp.gt.f32.partialorder %v1038, 0.0
    %v1040 = vmul.f32 %v1038, 0.1
    %v1041 = vsel %vm1039, %v1038, %v1040
    %1043 = vrot.lane.b32.xlu0 %v1041, 32
    %v1044 = vpop.permute.xlu0 %1043
    %1046 = vst.msk [vmem:[#allocation16] sm:$0xff] %vm348, %v1044
    %1047 = vrot.lane.b32.xlu0 %v1041, 64
    %v1048 = vpop.permute.xlu0 %1047
    %v1050 = vsel %vm348, %v1044, %v1048
    %v1051 = vpack.c.bf16 %v1050, %v1050
    %v1052 = vld [vmem:[#allocation10] sm:$0xff]
    %v1053 = vld [vmem:[#allocation10 + $0x8] sm:$0xff]
    %v1054 = vld [vmem:[#allocation10 + $0x10] sm:$0xff]
    %v1055 = vld [vmem:[#allocation10 + $0x18] sm:$0xff]
    %v1056 = vld [vmem:[#allocation10 + $0x20] sm:$0xff]
    %v1057 = vld [vmem:[#allocation10 + $0x28] sm:$0xff]
    %v1058 = vld [vmem:[#allocation10 + $0x30] sm:$0xff]
    %v1059 = vld [vmem:[#allocation10 + $0x38] sm:$0xff]
    %v1060 = vld [vmem:[#allocation11] sm:$0x3]
    %v1062 = vlaneseq
    %v1063 = vshrl.u32 %v1062, 7
    %v1064 = vsub.s32 0, %v1063
    %v1065 = vrot.slane %v1060, %v1064
    %v1066 = vlaneseq
    %v1067 = vshrl.u32 %v1066, 7
    %v1068 = vsub.s32 1, %v1067
    %v1069 = vrot.slane %v1060, %v1068
    %v1080 = vunpack.c.l.b16 %v1052
    %v1081 = vunpack.c.h.b16 %v1052
    %v1082 = vunpack.c.l.b16 %v1053
    %v1083 = vunpack.c.h.b16 %v1053
    %v1084 = vunpack.c.l.b16 %v1054
    %v1085 = vunpack.c.h.b16 %v1054
    %v1086 = vunpack.c.l.b16 %v1055
    %v1087 = vunpack.c.h.b16 %v1055
    %v1088 = vunpack.c.l.b16 %v1056
    %v1089 = vunpack.c.h.b16 %v1056
    %v1090 = vunpack.c.l.b16 %v1057
    %v1091 = vunpack.c.h.b16 %v1057
    %v1092 = vunpack.c.l.b16 %v1058
    %v1093 = vunpack.c.h.b16 %v1058
    %v1094 = vunpack.c.l.b16 %v1059
    %v1095 = vunpack.c.h.b16 %v1059
    %v1096 = vpack.c.b16 %v1082, %v1080
    %v1097 = vpack.c.b16 %v1083, %v1081
    %v1098 = vpack.c.b16 %v1086, %v1084
    %v1099 = vpack.c.b16 %v1087, %v1085
    %v1100 = vpack.c.b16 %v1090, %v1088
    %v1101 = vpack.c.b16 %v1091, %v1089
    %v1102 = vpack.c.b16 %v1094, %v1092
    %v1103 = vpack.c.b16 %v1095, %v1093
    %v1113 = vsel %vm483, %v1051, 0
    %1115 = vmatprep.subr.bf16.mxu0 %v1097
    %1116 = vmatpush1.bf16.msra.mxu0 %v1096
    %1117 = vmatprep.subr.bf16.mxu0 %v1099
    %1118 = vmatpush1.bf16.msra.mxu0 %v1098
    %1119 = vmatprep.subr.bf16.mxu0 %v1101
    %1120 = vmatpush1.bf16.msra.mxu0 %v1100
    %1121 = vmatprep.subr.bf16.mxu0 %v1103
    %1122 = vmatpush1.bf16.msra.mxu0 %v1102
    %1123 = vmatprep.subr.bf16.mxu0 0
    %1124 = vmatpush1.bf16.msra.mxu0 0
    %1125 = vmatprep.subr.bf16.mxu0 0
    %1126 = vmatpush1.bf16.msra.mxu0 0
    %1127 = vmatprep.subr.bf16.mxu0 0
    %1128 = vmatpush1.bf16.msra.mxu0 0
    %1129 = vmatprep.subr.bf16.mxu0 0
    %1130 = vmatpush1.bf16.msra.mxu0 0
    %1131 = vmatprep.subr.bf16.mxu0 0
    %1132 = vmatpush1.bf16.msra.mxu0 0
    %1133 = vmatprep.subr.bf16.mxu0 0
    %1134 = vmatpush1.bf16.msra.mxu0 0
    %1135 = vmatprep.subr.bf16.mxu0 0
    %1136 = vmatpush1.bf16.msra.mxu0 0
    %1137 = vmatprep.subr.bf16.mxu0 0
    %1138 = vmatpush1.bf16.msra.mxu0 0
    %1139 = vmatprep.subr.bf16.mxu0 0
    %1140 = vmatpush1.bf16.msra.mxu0 0
    %1141 = vmatprep.subr.bf16.mxu0 0
    %1142 = vmatpush1.bf16.msra.mxu0 0
    %1143 = vmatprep.subr.bf16.mxu0 0
    %1144 = vmatpush1.bf16.msra.mxu0 0
    %1145 = vmatprep.subr.bf16.mxu0 0
    %1146 = vmatpush1.bf16.msra.mxu0 0
    %1147 = vmatprep.mubr.bf16.mxu0 0
    %1148 = vmatmul.mubr.bf16.gmra.mrb[0].mxu0 %v1113
    %v1149 = vpop.f32.mrb[0].mxu0
    %v1150 = vadd.f32 %v1065, %v1149
    %v1151 = vpop.f32.mrb[0].mxu0
    %v1152 = vadd.f32 %v1069, %v1151
    %v1153 = vpop.f32.mrb[0].mxu0
    %v1154 = vpop.f32.mrb[0].mxu0
    %1155 = vdwg.mxu0
    %v1156 = vld [vmem:[#allocation13] sm:$0xff]
    %v1157 = vld [vmem:[#allocation13 + $0x8] sm:$0xff]
    %v1158 = vld [vmem:[#allocation13 + $0x10] sm:$0xff]
    %v1159 = vld [vmem:[#allocation13 + $0x18] sm:$0xff]
    %v1160 = vld [vmem:[#allocation13 + $0x20] sm:$0xff]
    %v1161 = vld [vmem:[#allocation13 + $0x28] sm:$0xff]
    %v1162 = vld [vmem:[#allocation13 + $0x30] sm:$0xff]
    %v1163 = vld [vmem:[#allocation13 + $0x38] sm:$0xff]
    %v1164 = vld [vmem:[%s12] sm:$0xff]
    %v1165 = vld [vmem:[%s12 + $0x8] sm:$0xff]
    %v1166 = vld [vmem:[%s12 + $0x10] sm:$0xff]
    %v1167 = vld [vmem:[%s12 + $0x18] sm:$0xff]
    %v1168 = vld [vmem:[%s12 + $0x20] sm:$0xff]
    %v1169 = vld [vmem:[%s12 + $0x28] sm:$0xff]
    %v1170 = vld [vmem:[%s12 + $0x30] sm:$0xff]
    %v1171 = vld [vmem:[%s12 + $0x38] sm:$0xff]
    %v1172 = vld [vmem:[%s12 + $0x40] sm:$0xff]
    %v1173 = vld [vmem:[%s12 + $0x48] sm:$0xff]
    %v1174 = vld [vmem:[%s12 + $0x50] sm:$0xff]
    %v1175 = vld [vmem:[%s12 + $0x58] sm:$0xff]
    %v1176 = vld [vmem:[%s12 + $0x60] sm:$0xff]
    %v1177 = vld [vmem:[%s12 + $0x68] sm:$0xff]
    %v1178 = vld [vmem:[%s12 + $0x70] sm:$0xff]
    %v1179 = vld [vmem:[%s12 + $0x78] sm:$0xff]
    %v1180 = vld [vmem:[#allocation14] sm:$0x3]
    %v1189 = vunpack.c.l.b16 %v1156
    %v1190 = vunpack.c.h.b16 %v1156
    %v1191 = vunpack.c.l.b16 %v1157
    %v1192 = vunpack.c.h.b16 %v1157
    %v1193 = vunpack.c.l.b16 %v1158
    %v1194 = vunpack.c.h.b16 %v1158
    %v1195 = vunpack.c.l.b16 %v1159
    %v1196 = vunpack.c.h.b16 %v1159
    %v1197 = vunpack.c.l.b16 %v1160
    %v1198 = vunpack.c.h.b16 %v1160
    %v1199 = vunpack.c.l.b16 %v1161
    %v1200 = vunpack.c.h.b16 %v1161
    %v1201 = vunpack.c.l.b16 %v1162
    %v1202 = vunpack.c.h.b16 %v1162
    %v1203 = vunpack.c.l.b16 %v1163
    %v1204 = vunpack.c.h.b16 %v1163
    %v1205 = vpack.c.b16 %v1191, %v1189
    %v1206 = vpack.c.b16 %v1192, %v1190
    %v1207 = vpack.c.b16 %v1195, %v1193
    %v1208 = vpack.c.b16 %v1196, %v1194
    %v1209 = vpack.c.b16 %v1199, %v1197
    %v1210 = vpack.c.b16 %v1200, %v1198
    %v1211 = vpack.c.b16 %v1203, %v1201
    %v1212 = vpack.c.b16 %v1204, %v1202
    %1221 = vmatprep.subr.bf16.mxu0 %v1206
    %1222 = vmatpush1.bf16.msra.mxu0 %v1205
    %1223 = vmatprep.subr.bf16.mxu0 %v1208
    %1224 = vmatpush1.bf16.msra.mxu0 %v1207
    %1225 = vmatprep.subr.bf16.mxu0 %v1210
    %1226 = vmatpush1.bf16.msra.mxu0 %v1209
    %1227 = vmatprep.subr.bf16.mxu0 %v1212
    %1228 = vmatpush1.bf16.msra.mxu0 %v1211
    %1229 = vmatprep.subr.bf16.mxu0 0
    %1230 = vmatpush1.bf16.msra.mxu0 0
    %1231 = vmatprep.subr.bf16.mxu0 0
    %1232 = vmatpush1.bf16.msra.mxu0 0
    %1233 = vmatprep.subr.bf16.mxu0 0
    %1234 = vmatpush1.bf16.msra.mxu0 0
    %1235 = vmatprep.subr.bf16.mxu0 0
    %1236 = vmatpush1.bf16.msra.mxu0 0
    %1237 = vmatprep.subr.bf16.mxu0 0
    %1238 = vmatpush1.bf16.msra.mxu0 0
    %1239 = vmatprep.subr.bf16.mxu0 0
    %1240 = vmatpush1.bf16.msra.mxu0 0
    %1241 = vmatprep.subr.bf16.mxu0 0
    %1242 = vmatpush1.bf16.msra.mxu0 0
    %1243 = vmatprep.subr.bf16.mxu0 0
    %1244 = vmatpush1.bf16.msra.mxu0 0
    %1245 = vmatprep.subr.bf16.mxu0 0
    %1246 = vmatpush1.bf16.msra.mxu0 0
    %1247 = vmatprep.subr.bf16.mxu0 0
    %1248 = vmatpush1.bf16.msra.mxu0 0
    %1249 = vmatprep.subr.bf16.mxu0 0
    %1250 = vmatpush1.bf16.msra.mxu0 0
    %1251 = vmatprep.subr.bf16.mxu0 0
    %1252 = vmatpush1.bf16.msra.mxu0 0
    %1253 = vmatprep.mubr.bf16.mxu0 0
    %1254 = vmatmul.mubr.bf16.gmra.mrb[0].mxu0 %v485
    %v1255 = vpop.f32.mrb[0].mxu0
    %v1256 = vadd.f32 0.0, %v1255
    %v1257 = vpop.f32.mrb[0].mxu0
    %v1258 = vadd.f32 0.0, %v1257
    %v1259 = vpop.f32.mrb[0].mxu0
    %v1260 = vpop.f32.mrb[0].mxu0
    %1261 = vdwg.mxu0
    %v1262 = vadd.f32 %v1150, %v1256
    %v1263 = vadd.f32 %v1152, %v1258
    %v1264 = vxor.u32 %v1262, 2147483648
    %v1265 = vxor.u32 %v1263, 2147483648
    %v1266 = vmul.f32 %v1264, 1.442695
    %v1267 = vpow.pop %v1266
    %v1268 = vmul.f32 %v1265, 1.442695
    %v1269 = vpow.pop %v1268
    %v1270 = vadd.f32 %v1267, 1.0
    %v1271 = vadd.f32 %v1269, 1.0
    %v1272 = vrcp.pop %v1270
    %v1273 = vmul.f32 1.0, %v1272
    %v1274 = vrcp.pop %v1271
    %v1275 = vmul.f32 1.0, %v1274
    %v1276 = vtanh.pop %v1263
    %v1277 = vmul.f32 %v1273, 0.0
    %1279 = vrot.lane.b32.xlu0 %v1276, 64
    %v1280 = vpop.permute.xlu0 %1279
    %v1282 = vmul.f32 %v1273, %v1280
    %1284 = vrot.lane.b32.xlu0 %v1282, 64
    %v1285 = vpop.permute.xlu0 %1284
    %v1287 = vadd.f32 %v1277, %v1285
    %v1288 = vtanh.pop %v1287
    %1290 = vrot.lane.b32.xlu0 %v1288, 64
    %v1291 = vpop.permute.xlu0 %1290
    %v1293 = vmul.f32 %v1275, %v1291
    %v1294 = vsel %vm483, %v1293, 0.0
    %v1295 = vpack.c.bf16 %v1294, %v1294
    %v1297 = vlaneseq
    %v1298 = vshrl.u32 %v1297, 7
    %v1299 = vsub.s32 0, %v1298
    %v1300 = vrot.slane %v1180, %v1299
    %v1301 = vlaneseq
    %v1302 = vshrl.u32 %v1301, 7
    %v1303 = vsub.s32 1, %v1302
    %v1304 = vrot.slane %v1180, %v1303
    %v1323 = vunpack.c.l.b16 %v1164
    %v1324 = vunpack.c.h.b16 %v1164
    %v1325 = vunpack.c.l.b16 %v1165
    %v1326 = vunpack.c.h.b16 %v1165
    %v1327 = vunpack.c.l.b16 %v1166
    %v1328 = vunpack.c.h.b16 %v1166
    %v1329 = vunpack.c.l.b16 %v1167
    %v1330 = vunpack.c.h.b16 %v1167
    %v1331 = vunpack.c.l.b16 %v1168
    %v1332 = vunpack.c.h.b16 %v1168
    %v1333 = vunpack.c.l.b16 %v1169
    %v1334 = vunpack.c.h.b16 %v1169
    %v1335 = vunpack.c.l.b16 %v1170
    %v1336 = vunpack.c.h.b16 %v1170
    %v1337 = vunpack.c.l.b16 %v1171
    %v1338 = vunpack.c.h.b16 %v1171
    %v1339 = vunpack.c.l.b16 %v1172
    %v1340 = vunpack.c.h.b16 %v1172
    %v1341 = vunpack.c.l.b16 %v1173
    %v1342 = vunpack.c.h.b16 %v1173
    %v1343 = vunpack.c.l.b16 %v1174
    %v1344 = vunpack.c.h.b16 %v1174
    %v1345 = vunpack.c.l.b16 %v1175
    %v1346 = vunpack.c.h.b16 %v1175
    %v1347 = vunpack.c.l.b16 %v1176
    %v1348 = vunpack.c.h.b16 %v1176
    %v1349 = vunpack.c.l.b16 %v1177
    %v1350 = vunpack.c.h.b16 %v1177
    %v1351 = vunpack.c.l.b16 %v1178
    %v1352 = vunpack.c.h.b16 %v1178
    %v1353 = vunpack.c.l.b16 %v1179
    %v1354 = vunpack.c.h.b16 %v1179
    %v1355 = vpack.c.b16 %v1325, %v1323
    %v1356 = vpack.c.b16 %v1326, %v1324
    %v1357 = vpack.c.b16 %v1329, %v1327
    %v1358 = vpack.c.b16 %v1330, %v1328
    %v1359 = vpack.c.b16 %v1333, %v1331
    %v1360 = vpack.c.b16 %v1334, %v1332
    %v1361 = vpack.c.b16 %v1337, %v1335
    %v1362 = vpack.c.b16 %v1338, %v1336
    %v1363 = vpack.c.b16 %v1341, %v1339
    %v1364 = vpack.c.b16 %v1342, %v1340
    %v1365 = vpack.c.b16 %v1345, %v1343
    %v1366 = vpack.c.b16 %v1346, %v1344
    %v1367 = vpack.c.b16 %v1349, %v1347
    %v1368 = vpack.c.b16 %v1350, %v1348
    %v1369 = vpack.c.b16 %v1353, %v1351
    %v1370 = vpack.c.b16 %v1354, %v1352
    %1387 = vmatprep.subr.bf16.mxu0 %v1356
    %1388 = vmatpush1.bf16.msra.mxu0 %v1355
    %1389 = vmatprep.subr.bf16.mxu0 %v1358
    %1390 = vmatpush1.bf16.msra.mxu0 %v1357
    %1391 = vmatprep.subr.bf16.mxu0 %v1360
    %1392 = vmatpush1.bf16.msra.mxu0 %v1359
    %1393 = vmatprep.subr.bf16.mxu0 %v1362
    %1394 = vmatpush1.bf16.msra.mxu0 %v1361
    %1395 = vmatprep.subr.bf16.mxu0 %v1364
    %1396 = vmatpush1.bf16.msra.mxu0 %v1363
    %1397 = vmatprep.subr.bf16.mxu0 %v1366
    %1398 = vmatpush1.bf16.msra.mxu0 %v1365
    %1399 = vmatprep.subr.bf16.mxu0 %v1368
    %1400 = vmatpush1.bf16.msra.mxu0 %v1367
    %1401 = vmatprep.subr.bf16.mxu0 %v1370
    %1402 = vmatpush1.bf16.msra.mxu0 %v1369
    %1403 = vmatprep.subr.bf16.mxu0 0
    %1404 = vmatpush1.bf16.msra.mxu0 0
    %1405 = vmatprep.subr.bf16.mxu0 0
    %1406 = vmatpush1.bf16.msra.mxu0 0
    %1407 = vmatprep.subr.bf16.mxu0 0
    %1408 = vmatpush1.bf16.msra.mxu0 0
    %1409 = vmatprep.subr.bf16.mxu0 0
    %1410 = vmatpush1.bf16.msra.mxu0 0
    %1411 = vmatprep.subr.bf16.mxu0 0
    %1412 = vmatpush1.bf16.msra.mxu0 0
    %1413 = vmatprep.subr.bf16.mxu0 0
    %1414 = vmatpush1.bf16.msra.mxu0 0
    %1415 = vmatprep.subr.bf16.mxu0 0
    %1416 = vmatpush1.bf16.msra.mxu0 0
    %1417 = vmatprep.subr.bf16.mxu0 0
    %1418 = vmatpush1.bf16.msra.mxu0 0
    %1419 = vmatprep.mubr.bf16.mxu0 0
    %1420 = vmatmul.mubr.bf16.gmra.mrb[0].mxu0 %v1295
    %v1421 = vpop.f32.mrb[0].mxu0
    %v1422 = vadd.f32 %v1300, %v1421
    %v1423 = vpop.f32.mrb[0].mxu0
    %v1424 = vadd.f32 %v1304, %v1423
    %v1425 = vpop.f32.mrb[0].mxu0
    %v1426 = vpop.f32.mrb[0].mxu0
    %1427 = vdwg.mxu0
    %v1428 = vxor.u32 %v1422, 2147483648
    %v1429 = vxor.u32 %v1424, 2147483648
    %v1430 = vmul.f32 %v1428, 1.442695
    %v1431 = vpow.pop %v1430
    %v1432 = vmul.f32 %v1429, 1.442695
    %v1433 = vpow.pop %v1432
    %v1434 = vadd.f32 %v1431, 1.0
    %v1435 = vadd.f32 %v1433, 1.0
    %v1436 = vrcp.pop %v1434
    %v1437 = vmul.f32 1.0, %v1436
    %v1438 = vrcp.pop %v1435
    %v1439 = vmul.f32 1.0, %v1438
    %v1440 = vtanh.pop %v1424
    %v1441 = vmul.f32 %v1437, 0.0
    %1443 = vrot.lane.b32.xlu0 %v1440, 64
    %v1444 = vpop.permute.xlu0 %1443
    %v1446 = vmul.f32 %v1437, %v1444
    %1448 = vrot.lane.b32.xlu0 %v1446, 64
    %v1449 = vpop.permute.xlu0 %1448
    %v1451 = vadd.f32 %v1441, %v1449
    %v1452 = vtanh.pop %v1451
    %1454 = vrot.lane.b32.xlu0 %v1452, 64
    %v1455 = vpop.permute.xlu0 %1454
    %v1457 = vmul.f32 %v1439, %v1455
    %v1458 = vmul.f32 %v1025, %v1457
    %v1459 = vmul.f32 %v1031, %v1457
    %1461 = vrot.lane.b32.xlu0 %v1459, 32
    %v1462 = vpop.permute.xlu0 %1461
    %v1464 = vadd.f32 %v1458, %v1462
    %v1465 = vpack.c.bf16 %v1293, %v1293
    %v1467 = vsel %vm483, %v1465, 0
    %1469 = vmatprep.subr.bf16.mxu0 %v1206
    %1470 = vmatpush1.bf16.msra.mxu0 %v1205
    %1471 = vmatprep.subr.bf16.mxu0 %v1208
    %1472 = vmatpush1.bf16.msra.mxu0 %v1207
    %1473 = vmatprep.subr.bf16.mxu0 %v1210
    %1474 = vmatpush1.bf16.msra.mxu0 %v1209
    %1475 = vmatprep.subr.bf16.mxu0 %v1212
    %1476 = vmatpush1.bf16.msra.mxu0 %v1211
    %1477 = vmatprep.subr.bf16.mxu0 0
    %1478 = vmatpush1.bf16.msra.mxu0 0
    %1479 = vmatprep.subr.bf16.mxu0 0
    %1480 = vmatpush1.bf16.msra.mxu0 0
    %1481 = vmatprep.subr.bf16.mxu0 0
    %1482 = vmatpush1.bf16.msra.mxu0 0
    %1483 = vmatprep.subr.bf16.mxu0 0
    %1484 = vmatpush1.bf16.msra.mxu0 0
    %1485 = vmatprep.subr.bf16.mxu0 0
    %1486 = vmatpush1.bf16.msra.mxu0 0
    %1487 = vmatprep.subr.bf16.mxu0 0
    %1488 = vmatpush1.bf16.msra.mxu0 0
    %1489 = vmatprep.subr.bf16.mxu0 0
    %1490 = vmatpush1.bf16.msra.mxu0 0
    %1491 = vmatprep.subr.bf16.mxu0 0
    %1492 = vmatpush1.bf16.msra.mxu0 0
    %1493 = vmatprep.subr.bf16.mxu0 0
    %1494 = vmatpush1.bf16.msra.mxu0 0
    %1495 = vmatprep.subr.bf16.mxu0 0
    %1496 = vmatpush1.bf16.msra.mxu0 0
    %1497 = vmatprep.subr.bf16.mxu0 0
    %1498 = vmatpush1.bf16.msra.mxu0 0
    %1499 = vmatprep.subr.bf16.mxu0 0
    %1500 = vmatpush1.bf16.msra.mxu0 0
    %1501 = vmatprep.mubr.bf16.mxu0 0
    %1502 = vmatmul.mubr.bf16.gmra.mrb[0].mxu0 %v1467
    %v1503 = vpop.f32.mrb[0].mxu0
    %v1504 = vadd.f32 0.0, %v1503
    %v1505 = vpop.f32.mrb[0].mxu0
    %v1506 = vadd.f32 0.0, %v1505
    %v1507 = vpop.f32.mrb[0].mxu0
    %v1508 = vpop.f32.mrb[0].mxu0
    %1509 = vdwg.mxu0
    %v1510 = vadd.f32 %v1150, %v1504
    %v1511 = vadd.f32 %v1152, %v1506
    %v1512 = vxor.u32 %v1510, 2147483648
    %v1513 = vxor.u32 %v1511, 2147483648
    %v1514 = vmul.f32 %v1512, 1.442695
    %v1515 = vpow.pop %v1514
    %v1516 = vmul.f32 %v1513, 1.442695
    %v1517 = vpow.pop %v1516
    %v1518 = vadd.f32 %v1515, 1.0
    %v1519 = vadd.f32 %v1517, 1.0
    %v1520 = vrcp.pop %v1518
    %v1521 = vmul.f32 1.0, %v1520
    %v1522 = vrcp.pop %v1519
    %v1523 = vmul.f32 1.0, %v1522
    %v1524 = vtanh.pop %v1511
    %v1525 = vmul.f32 %v1521, %v1287
    %1527 = vrot.lane.b32.xlu0 %v1524, 64
    %v1528 = vpop.permute.xlu0 %1527
    %v1530 = vmul.f32 %v1521, %v1528
    %1532 = vrot.lane.b32.xlu0 %v1530, 64
    %v1533 = vpop.permute.xlu0 %1532
    %v1535 = vadd.f32 %v1525, %v1533
    %v1536 = vtanh.pop %v1535
    %1538 = vrot.lane.b32.xlu0 %v1536, 64
    %v1539 = vpop.permute.xlu0 %1538
    %v1541 = vmul.f32 %v1523, %v1539
    %1543 = vrot.lane.b32.xlu0 %v1457, 64
    %v1544 = vpop.permute.xlu0 %1543
    %v1546 = vsel %vm483, %v1541, %v1544
    %v1547 = vpack.c.bf16 %v1546, %v1546
    %1548 = vmatprep.subr.bf16.mxu0 %v1356
    %1549 = vmatpush1.bf16.msra.mxu0 %v1355
    %1550 = vmatprep.subr.bf16.mxu0 %v1358
    %1551 = vmatpush1.bf16.msra.mxu0 %v1357
    %1552 = vmatprep.subr.bf16.mxu0 %v1360
    %1553 = vmatpush1.bf16.msra.mxu0 %v1359
    %1554 = vmatprep.subr.bf16.mxu0 %v1362
    %1555 = vmatpush1.bf16.msra.mxu0 %v1361
    %1556 = vmatprep.subr.bf16.mxu0 %v1364
    %1557 = vmatpush1.bf16.msra.mxu0 %v1363
    %1558 = vmatprep.subr.bf16.mxu0 %v1366
    %1559 = vmatpush1.bf16.msra.mxu0 %v1365
    %1560 = vmatprep.subr.bf16.mxu0 %v1368
    %1561 = vmatpush1.bf16.msra.mxu0 %v1367
    %1562 = vmatprep.subr.bf16.mxu0 %v1370
    %1563 = vmatpush1.bf16.msra.mxu0 %v1369
    %1564 = vmatprep.subr.bf16.mxu0 0
    %1565 = vmatpush1.bf16.msra.mxu0 0
    %1566 = vmatprep.subr.bf16.mxu0 0
    %1567 = vmatpush1.bf16.msra.mxu0 0
    %1568 = vmatprep.subr.bf16.mxu0 0
    %1569 = vmatpush1.bf16.msra.mxu0 0
    %1570 = vmatprep.subr.bf16.mxu0 0
    %1571 = vmatpush1.bf16.msra.mxu0 0
    %1572 = vmatprep.subr.bf16.mxu0 0
    %1573 = vmatpush1.bf16.msra.mxu0 0
    %1574 = vmatprep.subr.bf16.mxu0 0
    %1575 = vmatpush1.bf16.msra.mxu0 0
    %1576 = vmatprep.subr.bf16.mxu0 0
    %1577 = vmatpush1.bf16.msra.mxu0 0
    %1578 = vmatprep.subr.bf16.mxu0 0
    %1579 = vmatpush1.bf16.msra.mxu0 0
    %1580 = vmatprep.mubr.bf16.mxu0 0
    %1581 = vmatmul.mubr.bf16.gmra.mrb[0].mxu0 %v1547
    %v1582 = vpop.f32.mrb[0].mxu0
    %v1583 = vadd.f32 %v1300, %v1582
    %v1584 = vpop.f32.mrb[0].mxu0
    %v1585 = vadd.f32 %v1304, %v1584
    %v1586 = vpop.f32.mrb[0].mxu0
    %v1587 = vpop.f32.mrb[0].mxu0
    %1588 = vdwg.mxu0
    %v1589 = vxor.u32 %v1583, 2147483648
    %v1590 = vxor.u32 %v1585, 2147483648
    %v1591 = vmul.f32 %v1589, 1.442695
    %v1592 = vpow.pop %v1591
    %v1593 = vmul.f32 %v1590, 1.442695
    %v1594 = vpow.pop %v1593
    %v1595 = vadd.f32 %v1592, 1.0
    %v1596 = vadd.f32 %v1594, 1.0
    %v1597 = vrcp.pop %v1595
    %v1598 = vmul.f32 1.0, %v1597
    %v1599 = vrcp.pop %v1596
    %v1600 = vmul.f32 1.0, %v1599
    %v1601 = vtanh.pop %v1585
    %v1602 = vmul.f32 %v1598, %v1451
    %1604 = vrot.lane.b32.xlu0 %v1601, 64
    %v1605 = vpop.permute.xlu0 %1604
    %v1607 = vmul.f32 %v1598, %v1605
    %1609 = vrot.lane.b32.xlu0 %v1607, 64
    %v1610 = vpop.permute.xlu0 %1609
    %v1612 = vadd.f32 %v1602, %v1610
    %v1613 = vtanh.pop %v1612
    %1615 = vrot.lane.b32.xlu0 %v1613, 64
    %v1616 = vpop.permute.xlu0 %1615
    %v1618 = vmul.f32 %v1600, %v1616
    %v1619 = vmul.f32 %v1025, %v1618
    %v1620 = vmul.f32 %v1031, %v1618
    %1622 = vrot.lane.b32.xlu0 %v1620, 32
    %v1623 = vpop.permute.xlu0 %1622
    %v1625 = vadd.f32 %v1619, %v1623
    %v1626 = vpack.c.bf16 %v1541, %v1541
    %v1628 = vsel %vm483, %v1626, 0
    %1630 = vmatprep.subr.bf16.mxu0 %v1206
    %1631 = vmatpush1.bf16.msra.mxu0 %v1205
    %1632 = vmatprep.subr.bf16.mxu0 %v1208
    %1633 = vmatpush1.bf16.msra.mxu0 %v1207
    %1634 = vmatprep.subr.bf16.mxu0 %v1210
    %1635 = vmatpush1.bf16.msra.mxu0 %v1209
    %1636 = vmatprep.subr.bf16.mxu0 %v1212
    %1637 = vmatpush1.bf16.msra.mxu0 %v1211
    %1638 = vmatprep.subr.bf16.mxu0 0
    %1639 = vmatpush1.bf16.msra.mxu0 0
    %1640 = vmatprep.subr.bf16.mxu0 0
    %1641 = vmatpush1.bf16.msra.mxu0 0
    %1642 = vmatprep.subr.bf16.mxu0 0
    %1643 = vmatpush1.bf16.msra.mxu0 0
    %1644 = vmatprep.subr.bf16.mxu0 0
    %1645 = vmatpush1.bf16.msra.mxu0 0
    %1646 = vmatprep.subr.bf16.mxu0 0
    %1647 = vmatpush1.bf16.msra.mxu0 0
    %1648 = vmatprep.subr.bf16.mxu0 0
    %1649 = vmatpush1.bf16.msra.mxu0 0
    %1650 = vmatprep.subr.bf16.mxu0 0
    %1651 = vmatpush1.bf16.msra.mxu0 0
    %1652 = vmatprep.subr.bf16.mxu0 0
    %1653 = vmatpush1.bf16.msra.mxu0 0
    %1654 = vmatprep.subr.bf16.mxu0 0
    %1655 = vmatpush1.bf16.msra.mxu0 0
    %1656 = vmatprep.subr.bf16.mxu0 0
    %1657 = vmatpush1.bf16.msra.mxu0 0
    %1658 = vmatprep.subr.bf16.mxu0 0
    %1659 = vmatpush1.bf16.msra.mxu0 0
    %1660 = vmatprep.subr.bf16.mxu0 0
    %1661 = vmatpush1.bf16.msra.mxu0 0
    %1662 = vmatprep.mubr.bf16.mxu0 0
    %1663 = vmatmul.mubr.bf16.gmra.mrb[0].mxu0 %v1628
    %v1664 = vpop.f32.mrb[0].mxu0
    %v1665 = vadd.f32 0.0, %v1664
    %v1666 = vpop.f32.mrb[0].mxu0
    %v1667 = vadd.f32 0.0, %v1666
    %v1668 = vpop.f32.mrb[0].mxu0
    %v1669 = vpop.f32.mrb[0].mxu0
    %1670 = vdwg.mxu0
    %v1671 = vadd.f32 %v1150, %v1665
    %v1672 = vadd.f32 %v1152, %v1667
    %v1673 = vxor.u32 %v1671, 2147483648
    %v1674 = vxor.u32 %v1672, 2147483648
    %v1675 = vmul.f32 %v1673, 1.442695
    %v1676 = vpow.pop %v1675
    %v1677 = vmul.f32 %v1674, 1.442695
    %v1678 = vpow.pop %v1677
    %v1679 = vadd.f32 %v1676, 1.0
    %v1680 = vadd.f32 %v1678, 1.0
    %v1681 = vrcp.pop %v1679
    %v1682 = vmul.f32 1.0, %v1681
    %v1683 = vrcp.pop %v1680
    %v1684 = vmul.f32 1.0, %v1683
    %v1685 = vtanh.pop %v1672
    %v1686 = vmul.f32 %v1682, %v1535
    %1688 = vrot.lane.b32.xlu0 %v1685, 64
    %v1689 = vpop.permute.xlu0 %1688
    %v1691 = vmul.f32 %v1682, %v1689
    %1693 = vrot.lane.b32.xlu0 %v1691, 64
    %v1694 = vpop.permute.xlu0 %1693
    %v1696 = vadd.f32 %v1686, %v1694
    %v1697 = vtanh.pop %v1696
    %1699 = vrot.lane.b32.xlu0 %v1697, 64
    %v1700 = vpop.permute.xlu0 %1699
    %v1702 = vmul.f32 %v1684, %v1700
    %1704 = vrot.lane.b32.xlu0 %v1618, 64
    %v1705 = vpop.permute.xlu0 %1704
    %v1707 = vsel %vm483, %v1702, %v1705
    %v1708 = vpack.c.bf16 %v1707, %v1707
    %1709 = vmatprep.subr.bf16.mxu0 %v1356
    %1710 = vmatpush1.bf16.msra.mxu0 %v1355
    %1711 = vmatprep.subr.bf16.mxu0 %v1358
    %1712 = vmatpush1.bf16.msra.mxu0 %v1357
    %1713 = vmatprep.subr.bf16.mxu0 %v1360
    %1714 = vmatpush1.bf16.msra.mxu0 %v1359
    %1715 = vmatprep.subr.bf16.mxu0 %v1362
    %1716 = vmatpush1.bf16.msra.mxu0 %v1361
    %1717 = vmatprep.subr.bf16.mxu0 %v1364
    %1718 = vmatpush1.bf16.msra.mxu0 %v1363
    %1719 = vmatprep.subr.bf16.mxu0 %v1366
    %1720 = vmatpush1.bf16.msra.mxu0 %v1365
    %1721 = vmatprep.subr.bf16.mxu0 %v1368
    %1722 = vmatpush1.bf16.msra.mxu0 %v1367
    %1723 = vmatprep.subr.bf16.mxu0 %v1370
    %1724 = vmatpush1.bf16.msra.mxu0 %v1369
    %1725 = vmatprep.subr.bf16.mxu0 0
    %1726 = vmatpush1.bf16.msra.mxu0 0
    %1727 = vmatprep.subr.bf16.mxu0 0
    %1728 = vmatpush1.bf16.msra.mxu0 0
    %1729 = vmatprep.subr.bf16.mxu0 0
    %1730 = vmatpush1.bf16.msra.mxu0 0
    %1731 = vmatprep.subr.bf16.mxu0 0
    %1732 = vmatpush1.bf16.msra.mxu0 0
    %1733 = vmatprep.subr.bf16.mxu0 0
    %1734 = vmatpush1.bf16.msra.mxu0 0
    %1735 = vmatprep.subr.bf16.mxu0 0
    %1736 = vmatpush1.bf16.msra.mxu0 0
    %1737 = vmatprep.subr.bf16.mxu0 0
    %1738 = vmatpush1.bf16.msra.mxu0 0
    %1739 = vmatprep.subr.bf16.mxu0 0
    %1740 = vmatpush1.bf16.msra.mxu0 0
    %1741 = vmatprep.mubr.bf16.mxu0 0
    %1742 = vmatmul.mubr.bf16.gmra.mrb[0].mxu0 %v1708
    %v1743 = vpop.f32.mrb[0].mxu0
    %v1744 = vadd.f32 %v1300, %v1743
    %v1745 = vpop.f32.mrb[0].mxu0
    %v1746 = vadd.f32 %v1304, %v1745
    %v1747 = vpop.f32.mrb[0].mxu0
    %v1748 = vpop.f32.mrb[0].mxu0
    %1749 = vdwg.mxu0
    %v1750 = vxor.u32 %v1744, 2147483648
    %v1751 = vxor.u32 %v1746, 2147483648
    %v1752 = vmul.f32 %v1750, 1.442695
    %v1753 = vpow.pop %v1752
    %v1754 = vmul.f32 %v1751, 1.442695
    %v1755 = vpow.pop %v1754
    %v1756 = vadd.f32 %v1753, 1.0
    %v1757 = vadd.f32 %v1755, 1.0
    %v1758 = vrcp.pop %v1756
    %v1759 = vmul.f32 1.0, %v1758
    %v1760 = vrcp.pop %v1757
    %v1761 = vmul.f32 1.0, %v1760
    %v1762 = vtanh.pop %v1746
    %v1763 = vmul.f32 %v1759, %v1612
    %1765 = vrot.lane.b32.xlu0 %v1762, 64
    %v1766 = vpop.permute.xlu0 %1765
    %v1768 = vmul.f32 %v1759, %v1766
    %1770 = vrot.lane.b32.xlu0 %v1768, 64
    %v1771 = vpop.permute.xlu0 %1770
    %v1773 = vadd.f32 %v1763, %v1771
    %v1774 = vtanh.pop %v1773
    %1776 = vrot.lane.b32.xlu0 %v1774, 64
    %v1777 = vpop.permute.xlu0 %1776
    %v1779 = vmul.f32 %v1761, %v1777
    %v1780 = vmul.f32 %v1025, %v1779
    %v1781 = vmul.f32 %v1031, %v1779
    %1783 = vrot.lane.b32.xlu0 %v1781, 32
    %v1784 = vpop.permute.xlu0 %1783
    %v1786 = vadd.f32 %v1780, %v1784
    %v1787 = vpack.c.bf16 %v1702, %v1702
    %v1789 = vsel %vm483, %v1787, 0
    %1791 = vmatprep.subr.bf16.mxu0 %v1206
    %1792 = vmatpush1.bf16.msra.mxu0 %v1205
    %1793 = vmatprep.subr.bf16.mxu0 %v1208
    %1794 = vmatpush1.bf16.msra.mxu0 %v1207
    %1795 = vmatprep.subr.bf16.mxu0 %v1210
    %1796 = vmatpush1.bf16.msra.mxu0 %v1209
    %1797 = vmatprep.subr.bf16.mxu0 %v1212
    %1798 = vmatpush1.bf16.msra.mxu0 %v1211
    %1799 = vmatprep.subr.bf16.mxu0 0
    %1800 = vmatpush1.bf16.msra.mxu0 0
    %1801 = vmatprep.subr.bf16.mxu0 0
    %1802 = vmatpush1.bf16.msra.mxu0 0
    %1803 = vmatprep.subr.bf16.mxu0 0
    %1804 = vmatpush1.bf16.msra.mxu0 0
    %1805 = vmatprep.subr.bf16.mxu0 0
    %1806 = vmatpush1.bf16.msra.mxu0 0
    %1807 = vmatprep.subr.bf16.mxu0 0
    %1808 = vmatpush1.bf16.msra.mxu0 0
    %1809 = vmatprep.subr.bf16.mxu0 0
    %1810 = vmatpush1.bf16.msra.mxu0 0
    %1811 = vmatprep.subr.bf16.mxu0 0
    %1812 = vmatpush1.bf16.msra.mxu0 0
    %1813 = vmatprep.subr.bf16.mxu0 0
    %1814 = vmatpush1.bf16.msra.mxu0 0
    %1815 = vmatprep.subr.bf16.mxu0 0
    %1816 = vmatpush1.bf16.msra.mxu0 0
    %1817 = vmatprep.subr.bf16.mxu0 0
    %1818 = vmatpush1.bf16.msra.mxu0 0
    %1819 = vmatprep.subr.bf16.mxu0 0
    %1820 = vmatpush1.bf16.msra.mxu0 0
    %1821 = vmatprep.subr.bf16.mxu0 0
    %1822 = vmatpush1.bf16.msra.mxu0 0
    %1823 = vmatprep.mubr.bf16.mxu0 0
    %1824 = vmatmul.mubr.bf16.gmra.mrb[0].mxu0 %v1789
    %v1825 = vpop.f32.mrb[0].mxu0
    %v1826 = vadd.f32 0.0, %v1825
    %v1827 = vpop.f32.mrb[0].mxu0
    %v1828 = vadd.f32 0.0, %v1827
    %v1829 = vpop.f32.mrb[0].mxu0
    %v1830 = vpop.f32.mrb[0].mxu0
    %1831 = vdwg.mxu0
    %v1832 = vadd.f32 %v1150, %v1826
    %v1833 = vadd.f32 %v1152, %v1828
    %v1834 = vxor.u32 %v1832, 2147483648
    %v1835 = vxor.u32 %v1833, 2147483648
    %v1836 = vmul.f32 %v1834, 1.442695
    %v1837 = vpow.pop %v1836
    %v1838 = vmul.f32 %v1835, 1.442695
    %v1839 = vpow.pop %v1838
    %v1840 = vadd.f32 %v1837, 1.0
    %v1841 = vadd.f32 %v1839, 1.0
    %v1842 = vrcp.pop %v1840
    %v1843 = vmul.f32 1.0, %v1842
    %v1844 = vrcp.pop %v1841
    %v1845 = vmul.f32 1.0, %v1844
    %v1846 = vtanh.pop %v1833
    %v1847 = vmul.f32 %v1843, %v1696
    %1849 = vrot.lane.b32.xlu0 %v1846, 64
    %v1850 = vpop.permute.xlu0 %1849
    %v1852 = vmul.f32 %v1843, %v1850
    %1854 = vrot.lane.b32.xlu0 %v1852, 64
    %v1855 = vpop.permute.xlu0 %1854
    %v1857 = vadd.f32 %v1847, %v1855
    %v1858 = vtanh.pop %v1857
    %1860 = vrot.lane.b32.xlu0 %v1858, 64
    %v1861 = vpop.permute.xlu0 %1860
    %v1863 = vmul.f32 %v1845, %v1861
    %1865 = vrot.lane.b32.xlu0 %v1779, 64
    %v1866 = vpop.permute.xlu0 %1865
    %v1868 = vsel %vm483, %v1863, %v1866
    %v1869 = vpack.c.bf16 %v1868, %v1868
    %1870 = vmatprep.subr.bf16.mxu0 %v1356
    %1871 = vmatpush1.bf16.msra.mxu0 %v1355
    %1872 = vmatprep.subr.bf16.mxu0 %v1358
    %1873 = vmatpush1.bf16.msra.mxu0 %v1357
    %1874 = vmatprep.subr.bf16.mxu0 %v1360
    %1875 = vmatpush1.bf16.msra.mxu0 %v1359
    %1876 = vmatprep.subr.bf16.mxu0 %v1362
    %1877 = vmatpush1.bf16.msra.mxu0 %v1361
    %1878 = vmatprep.subr.bf16.mxu0 %v1364
    %1879 = vmatpush1.bf16.msra.mxu0 %v1363
    %1880 = vmatprep.subr.bf16.mxu0 %v1366
    %1881 = vmatpush1.bf16.msra.mxu0 %v1365
    %1882 = vmatprep.subr.bf16.mxu0 %v1368
    %1883 = vmatpush1.bf16.msra.mxu0 %v1367
    %1884 = vmatprep.subr.bf16.mxu0 %v1370
    %1885 = vmatpush1.bf16.msra.mxu0 %v1369
    %1886 = vmatprep.subr.bf16.mxu0 0
    %1887 = vmatpush1.bf16.msra.mxu0 0
    %1888 = vmatprep.subr.bf16.mxu0 0
    %1889 = vmatpush1.bf16.msra.mxu0 0
    %1890 = vmatprep.subr.bf16.mxu0 0
    %1891 = vmatpush1.bf16.msra.mxu0 0
    %1892 = vmatprep.subr.bf16.mxu0 0
    %1893 = vmatpush1.bf16.msra.mxu0 0
    %1894 = vmatprep.subr.bf16.mxu0 0
    %1895 = vmatpush1.bf16.msra.mxu0 0
    %1896 = vmatprep.subr.bf16.mxu0 0
    %1897 = vmatpush1.bf16.msra.mxu0 0
    %1898 = vmatprep.subr.bf16.mxu0 0
    %1899 = vmatpush1.bf16.msra.mxu0 0
    %1900 = vmatprep.subr.bf16.mxu0 0
    %1901 = vmatpush1.bf16.msra.mxu0 0
    %1902 = vmatprep.mubr.bf16.mxu0 0
    %1903 = vmatmul.mubr.bf16.gmra.mrb[0].mxu0 %v1869
    %v1904 = vpop.f32.mrb[0].mxu0
    %v1905 = vadd.f32 %v1300, %v1904
    %v1906 = vpop.f32.mrb[0].mxu0
    %v1907 = vadd.f32 %v1304, %v1906
    %v1908 = vpop.f32.mrb[0].mxu0
    %v1909 = vpop.f32.mrb[0].mxu0
    %1910 = vdwg.mxu0
    %v1911 = vxor.u32 %v1905, 2147483648
    %v1912 = vxor.u32 %v1907, 2147483648
    %v1913 = vmul.f32 %v1911, 1.442695
    %v1914 = vpow.pop %v1913
    %v1915 = vmul.f32 %v1912, 1.442695
    %v1916 = vpow.pop %v1915
    %v1917 = vadd.f32 %v1914, 1.0
    %v1918 = vadd.f32 %v1916, 1.0
    %v1919 = vrcp.pop %v1917
    %v1920 = vmul.f32 1.0, %v1919
    %v1921 = vrcp.pop %v1918
    %v1922 = vmul.f32 1.0, %v1921
    %v1923 = vtanh.pop %v1907
    %v1924 = vmul.f32 %v1920, %v1773
    %1926 = vrot.lane.b32.xlu0 %v1923, 64
    %v1927 = vpop.permute.xlu0 %1926
    %v1929 = vmul.f32 %v1920, %v1927
    %1931 = vrot.lane.b32.xlu0 %v1929, 64
    %v1932 = vpop.permute.xlu0 %1931
    %v1934 = vadd.f32 %v1924, %v1932
    %v1935 = vtanh.pop %v1934
    %1937 = vrot.lane.b32.xlu0 %v1935, 64
    %v1938 = vpop.permute.xlu0 %1937
    %v1940 = vmul.f32 %v1922, %v1938
    %v1941 = vmul.f32 %v1025, %v1940
    %v1942 = vmul.f32 %v1031, %v1940
    %1944 = vrot.lane.b32.xlu0 %v1942, 32
    %v1945 = vpop.permute.xlu0 %1944
    %v1947 = vadd.f32 %v1941, %v1945
    %v1948 = vpack.c.bf16 %v1863, %v1863
    %v1950 = vsel %vm483, %v1948, 0
    %1952 = vmatprep.subr.bf16.mxu0 %v1206
    %1953 = vmatpush1.bf16.msra.mxu0 %v1205
    %1954 = vmatprep.subr.bf16.mxu0 %v1208
    %1955 = vmatpush1.bf16.msra.mxu0 %v1207
    %1956 = vmatprep.subr.bf16.mxu0 %v1210
    %1957 = vmatpush1.bf16.msra.mxu0 %v1209
    %1958 = vmatprep.subr.bf16.mxu0 %v1212
    %1959 = vmatpush1.bf16.msra.mxu0 %v1211
    %1960 = vmatprep.subr.bf16.mxu0 0
    %1961 = vmatpush1.bf16.msra.mxu0 0
    %1962 = vmatprep.subr.bf16.mxu0 0
    %1963 = vmatpush1.bf16.msra.mxu0 0
    %1964 = vmatprep.subr.bf16.mxu0 0
    %1965 = vmatpush1.bf16.msra.mxu0 0
    %1966 = vmatprep.subr.bf16.mxu0 0
    %1967 = vmatpush1.bf16.msra.mxu0 0
    %1968 = vmatprep.subr.bf16.mxu0 0
    %1969 = vmatpush1.bf16.msra.mxu0 0
    %1970 = vmatprep.subr.bf16.mxu0 0
    %1971 = vmatpush1.bf16.msra.mxu0 0
    %1972 = vmatprep.subr.bf16.mxu0 0
    %1973 = vmatpush1.bf16.msra.mxu0 0
    %1974 = vmatprep.subr.bf16.mxu0 0
    %1975 = vmatpush1.bf16.msra.mxu0 0
    %1976 = vmatprep.subr.bf16.mxu0 0
    %1977 = vmatpush1.bf16.msra.mxu0 0
    %1978 = vmatprep.subr.bf16.mxu0 0
    %1979 = vmatpush1.bf16.msra.mxu0 0
    %1980 = vmatprep.subr.bf16.mxu0 0
    %1981 = vmatpush1.bf16.msra.mxu0 0
    %1982 = vmatprep.subr.bf16.mxu0 0
    %1983 = vmatpush1.bf16.msra.mxu0 0
    %1984 = vmatprep.mubr.bf16.mxu0 0
    %1985 = vmatmul.mubr.bf16.gmra.mrb[0].mxu0 %v1950
    %v1986 = vpop.f32.mrb[0].mxu0
    %v1987 = vadd.f32 0.0, %v1986
    %v1988 = vpop.f32.mrb[0].mxu0
    %v1989 = vadd.f32 0.0, %v1988
    %v1990 = vpop.f32.mrb[0].mxu0
    %v1991 = vpop.f32.mrb[0].mxu0
    %1992 = vdwg.mxu0
    %v1993 = vadd.f32 %v1150, %v1987
    %v1994 = vadd.f32 %v1152, %v1989
    %v1995 = vxor.u32 %v1993, 2147483648
    %v1996 = vxor.u32 %v1994, 2147483648
    %v1997 = vmul.f32 %v1995, 1.442695
    %v1998 = vpow.pop %v1997
    %v1999 = vmul.f32 %v1996, 1.442695
    %v2000 = vpow.pop %v1999
    %v2001 = vadd.f32 %v1998, 1.0
    %v2002 = vadd.f32 %v2000, 1.0
    %v2003 = vrcp.pop %v2001
    %v2004 = vmul.f32 1.0, %v2003
    %v2005 = vrcp.pop %v2002
    %v2006 = vmul.f32 1.0, %v2005
    %v2007 = vtanh.pop %v1994
    %v2008 = vmul.f32 %v2004, %v1857
    %2010 = vrot.lane.b32.xlu0 %v2007, 64
    %v2011 = vpop.permute.xlu0 %2010
    %v2013 = vmul.f32 %v2004, %v2011
    %2015 = vrot.lane.b32.xlu0 %v2013, 64
    %v2016 = vpop.permute.xlu0 %2015
    %v2018 = vadd.f32 %v2008, %v2016
    %v2019 = vtanh.pop %v2018
    %2021 = vrot.lane.b32.xlu0 %v2019, 64
    %v2022 = vpop.permute.xlu0 %2021
    %v2024 = vmul.f32 %v2006, %v2022
    %2026 = vrot.lane.b32.xlu0 %v1940, 64
    %v2027 = vpop.permute.xlu0 %2026
    %v2029 = vsel %vm483, %v2024, %v2027
    %v2030 = vpack.c.bf16 %v2029, %v2029
    %2031 = vmatprep.subr.bf16.mxu0 %v1356
    %2032 = vmatpush1.bf16.msra.mxu0 %v1355
    %2033 = vmatprep.subr.bf16.mxu0 %v1358
    %2034 = vmatpush1.bf16.msra.mxu0 %v1357
    %2035 = vmatprep.subr.bf16.mxu0 %v1360
    %2036 = vmatpush1.bf16.msra.mxu0 %v1359
    %2037 = vmatprep.subr.bf16.mxu0 %v1362
    %2038 = vmatpush1.bf16.msra.mxu0 %v1361
    %2039 = vmatprep.subr.bf16.mxu0 %v1364
    %2040 = vmatpush1.bf16.msra.mxu0 %v1363
    %2041 = vmatprep.subr.bf16.mxu0 %v1366
    %2042 = vmatpush1.bf16.msra.mxu0 %v1365
    %2043 = vmatprep.subr.bf16.mxu0 %v1368
    %2044 = vmatpush1.bf16.msra.mxu0 %v1367
    %2045 = vmatprep.subr.bf16.mxu0 %v1370
    %2046 = vmatpush1.bf16.msra.mxu0 %v1369
    %2047 = vmatprep.subr.bf16.mxu0 0
    %2048 = vmatpush1.bf16.msra.mxu0 0
    %2049 = vmatprep.subr.bf16.mxu0 0
    %2050 = vmatpush1.bf16.msra.mxu0 0
    %2051 = vmatprep.subr.bf16.mxu0 0
    %2052 = vmatpush1.bf16.msra.mxu0 0
    %2053 = vmatprep.subr.bf16.mxu0 0
    %2054 = vmatpush1.bf16.msra.mxu0 0
    %2055 = vmatprep.subr.bf16.mxu0 0
    %2056 = vmatpush1.bf16.msra.mxu0 0
    %2057 = vmatprep.subr.bf16.mxu0 0
    %2058 = vmatpush1.bf16.msra.mxu0 0
    %2059 = vmatprep.subr.bf16.mxu0 0
    %2060 = vmatpush1.bf16.msra.mxu0 0
    %2061 = vmatprep.subr.bf16.mxu0 0
    %2062 = vmatpush1.bf16.msra.mxu0 0
    %2063 = vmatprep.mubr.bf16.mxu0 0
    %2064 = vmatmul.mubr.bf16.gmra.mrb[0].mxu0 %v2030
    %v2065 = vpop.f32.mrb[0].mxu0
    %v2066 = vadd.f32 %v1300, %v2065
    %v2067 = vpop.f32.mrb[0].mxu0
    %v2068 = vadd.f32 %v1304, %v2067
    %v2069 = vpop.f32.mrb[0].mxu0
    %v2070 = vpop.f32.mrb[0].mxu0
    %2071 = vdwg.mxu0
    %v2072 = vxor.u32 %v2066, 2147483648
    %v2073 = vxor.u32 %v2068, 2147483648
    %v2074 = vmul.f32 %v2072, 1.442695
    %v2075 = vpow.pop %v2074
    %v2076 = vmul.f32 %v2073, 1.442695
    %v2077 = vpow.pop %v2076
    %v2078 = vadd.f32 %v2075, 1.0
    %v2079 = vadd.f32 %v2077, 1.0
    %v2080 = vrcp.pop %v2078
    %v2081 = vmul.f32 1.0, %v2080
    %v2082 = vrcp.pop %v2079
    %v2083 = vmul.f32 1.0, %v2082
    %v2084 = vtanh.pop %v2068
    %v2085 = vmul.f32 %v2081, %v1934
    %2087 = vrot.lane.b32.xlu0 %v2084, 64
    %v2088 = vpop.permute.xlu0 %2087
    %v2090 = vmul.f32 %v2081, %v2088
    %2092 = vrot.lane.b32.xlu0 %v2090, 64
    %v2093 = vpop.permute.xlu0 %2092
    %v2095 = vadd.f32 %v2085, %v2093
    %v2096 = vtanh.pop %v2095
    %2098 = vrot.lane.b32.xlu0 %v2096, 64
    %v2099 = vpop.permute.xlu0 %2098
    %v2101 = vmul.f32 %v2083, %v2099
    %v2102 = vmul.f32 %v1025, %v2101
    %v2103 = vmul.f32 %v1031, %v2101
    %2105 = vrot.lane.b32.xlu0 %v2103, 32
    %v2106 = vpop.permute.xlu0 %2105
    %v2108 = vadd.f32 %v2102, %v2106
    %2114 = vrot.lane.b32.xlu0 %v1464, 96
    %v2115 = vpop.permute.xlu0 %2114
    %2116 = vrot.lane.b32.xlu0 %v1625, 96
    %v2117 = vpop.permute.xlu0 %2116
    %2118 = vrot.lane.b32.xlu0 %v1786, 96
    %v2119 = vpop.permute.xlu0 %2118
    %2120 = vrot.lane.b32.xlu0 %v1947, 96
    %v2121 = vpop.permute.xlu0 %2120
    %2122 = vrot.lane.b32.xlu0 %v2108, 96
    %v2123 = vpop.permute.xlu0 %2122
    %2129 = vst.msk [vmem:[%s15] sm:$0xff] %vm348, %v2115
    %2130 = vst.msk [vmem:[%s15 + $0x8] sm:$0xff] %vm348, %v2117
    %2131 = vst.msk [vmem:[%s15 + $0x10] sm:$0xff] %vm348, %v2119
    %2132 = vst.msk [vmem:[%s15 + $0x18] sm:$0xff] %vm348, %v2121
    %2133 = vst.msk [vmem:[%s15 + $0x20] sm:$0xff] %vm348, %v2123
    // Predicated region
    $region90: #{it_base_net_apply.1} parent=1 // pred_check
      _
    $region91: #{it_base_net_apply.1} parent=1 // pred_check_branch
      %2135 = sbr.rel (0) target = $region93
    $region92: #{it_base_net_apply.1} parent=1 // pred_region
      %s2137 = ssub.s32 128, 128
      %2138 = vsyncadd [#allocation4], %s2137
      %s2140 = sshll.u32 [#allocation16], 4
      %s2141 = int_to_ptr.vmem [resolvable:$true] %s2140
      %2143 = dma.vmem_to_hbm [thread:$0]  %s2141, 128, %s14, [#allocation4]
    $region93: #{it_base_net_apply.1} parent=1 // pred_fallthru
      _
    // Predicated region
    $region94: #{it_base_net_apply.1} parent=1 // pred_check
      _
    $region95: #{it_base_net_apply.1} parent=1 // pred_check_branch
      %2145 = sbr.rel (0) target = $region97
    $region96: #{it_base_net_apply.1} parent=1 // pred_region
      _
    $region97: #{it_base_net_apply.1} parent=1 // pred_fallthru
      _
    // Predicated region
    $region98: #{it_base_net_apply.1} parent=1 // pred_check
      _
    $region99: #{it_base_net_apply.1} parent=1 // pred_check_branch
      %2147 = sbr.rel (0) target = $region101
    $region100: #{it_base_net_apply.1} parent=1 // pred_region
      %2148 = dma.done [#allocation4], 128
    $region101: #{it_base_net_apply.1} parent=1 // pred_fallthru
      _
    // Predicated region
    $region102: #{it_base_net_apply.1} parent=1 // pred_check
      _
    $region103: #{it_base_net_apply.1} parent=1 // pred_check_branch
      %2150 = sbr.rel (0) target = $region105
    $region104: #{it_base_net_apply.1} parent=1 // pred_region
      _
    $region105: #{it_base_net_apply.1} parent=1 // pred_fallthru
      _
    %2151 = vsyncpa [#allocation3], 1
    %2152 = vsyncpa [#allocation6], 1
    %2153 = vsyncpa [#allocation9], 1
    %2154 = vsyncpa [#allocation12], 1
    %2155 = vsyncpa [#allocation15], 1
    %2156 = vsyncpa [#allocation4], 1

</llo_original>
